<compile_context>
chip_gen: v7x
topology: tpu7x:2x2x1
jax: 0.10.0
libtpu: 0.0.40
codegen_flags: <defaults>
</compile_context>

<pallas_src>
import functools

import jax
import jax.numpy as jnp
from jax import lax
from jax.experimental import pallas as pl
from jax.experimental.pallas import tpu as pltpu


# ----------------------------------------------------------------------------
# small helpers
# ----------------------------------------------------------------------------
def _round_up(x, m):
    return (x + m - 1) // m * m


def _largest_divisor(total, cap, step):
    """Largest multiple of `step` dividing `total` and <= cap (fallback: step)."""
    best = step
    t = step
    lim = min(total, cap)
    while t <= lim:
        if total % t == 0:
            best = t
        t += step
    return best


def _vmem_limit(est_bytes):
    return int(min(max(int(est_bytes * 1.5) + (2 << 20), 32 << 20), 64 << 20))


# ----------------------------------------------------------------------------
# Pallas kernel 1: fused (A @ B) * scale + bias [+ residual] [+ ReLU]
#   bf16 MXU operands, f32 accumulation, bf16 outputs, epilogue-merged last K.
# ----------------------------------------------------------------------------
def _mm_epilogue(acc, s_ref, t_ref, r_ref, relu, o_ref):
    y = acc * s_ref[...] + t_ref[...]
    if r_ref is not None:
        y = y + r_ref[...].astype(jnp.float32)
    if relu:
        y = jnp.maximum(y, 0.0)
    o_ref[...] = y.astype(o_ref.dtype)


def _mm_single_kernel(a_ref, b_ref, s_ref, t_ref, o_ref, *, relu):
    acc = jnp.dot(a_ref[...], b_ref[...], preferred_element_type=jnp.float32)
    _mm_epilogue(acc, s_ref, t_ref, None, relu, o_ref)


def _mm_single_res_kernel(a_ref, b_ref, s_ref, t_ref, r_ref, o_ref, *, relu):
    acc = jnp.dot(a_ref[...], b_ref[...], preferred_element_type=jnp.float32)
    _mm_epilogue(acc, s_ref, t_ref, r_ref, relu, o_ref)


def _mm_multi_kernel(a_ref, b_ref, s_ref, t_ref, o_ref, acc_ref, *, relu, nk):
    k = pl.program_id(2)
    part = jnp.dot(a_ref[...], b_ref[...], preferred_element_type=jnp.float32)

    @pl.when(k == 0)
    def _():
        acc_ref[...] = part

    @pl.when(jnp.logical_and(k > 0, k < nk - 1))
    def _():
        acc_ref[...] = acc_ref[...] + part

    @pl.when(k == nk - 1)
    def _():
        _mm_epilogue(acc_ref[...] + part, s_ref, t_ref, None, relu, o_ref)


def _mm_multi_res_kernel(a_ref, b_ref, s_ref, t_ref, r_ref, o_ref, acc_ref, *,
                         relu, nk):
    k = pl.program_id(2)
    part = jnp.dot(a_ref[...], b_ref[...], preferred_element_type=jnp.float32)

    @pl.when(k == 0)
    def _():
        acc_ref[...] = part

    @pl.when(jnp.logical_and(k > 0, k < nk - 1))
    def _():
        acc_ref[...] = acc_ref[...] + part

    @pl.when(k == nk - 1)
    def _():
        _mm_epilogue(acc_ref[...] + part, s_ref, t_ref, r_ref, relu, o_ref)


def matmul_scale_bias(a, b, scale, bias, relu=False, residual=None,
                      out_dtype=jnp.bfloat16):
    """out = act((a @ b) * scale + bias [+ residual]); bf16 operands, f32 acc."""
    M, K = a.shape
    Kb, N = b.shape
    assert K == Kb
    a = a.astype(jnp.bfloat16)
    b = b.astype(jnp.bfloat16)

    # --- tile selection (divisor tiles to avoid pad copies, lane-dense N) ---
    tm_cap = 512
    Mr = _round_up(M, 8)
    if Mr <= tm_cap:
        tm = Mr
    else:
        tm = _largest_divisor(Mr, tm_cap, 8)
        if tm < 128:
            tm = tm_cap
    Mp = _round_up(M, tm)

    if N % 128 == 0:
        cap_n = 512
        if Mp == tm and N >= 512:
            cap_n = 256          # keep >=2 N blocks so both v7x cores get work
        tn = _largest_divisor(N, cap_n, 128)
    else:
        tn = N                   # full-dim (unaligned) lane block, no pad

    if K <= 768:
        tk, nk, Kp = K, 1, K     # single K block covering full K
    else:
        Kp = _round_up(K, 128)
        tk = _largest_divisor(Kp, 1024, 128)   # >=2 K steps keep DMA overlapped
        nk = Kp // tk

    if Mp != M or Kp != K:
        a = jnp.pad(a, ((0, Mp - M), (0, Kp - K)))
    if Kp != K:
        b = jnp.pad(b, ((0, Kp - K), (0, 0)))
    if residual is not None:
        residual = residual.astype(jnp.bfloat16)
        if Mp != M:
            residual = jnp.pad(residual, ((0, Mp - M), (0, 0)))

    s2 = scale.reshape(1, N).astype(jnp.float32)
    t2 = bias.reshape(1, N).astype(jnp.float32)

    est = 2 * (tm * tk + tk * tn) * 2 + 2 * tm * tn * 2
    if nk > 1:
        est += tm * tn * 4
    if residual is not None:
        est += 2 * tm * tn * 2

    operands = [a, b, s2, t2]
    if nk == 1:
        grid = (Mp // tm, N // tn)
        in_specs = [pl.BlockSpec((tm, tk), lambda i, j: (i, 0)),
                    pl.BlockSpec((tk, tn), lambda i, j: (0, j)),
                    pl.BlockSpec((1, tn), lambda i, j: (0, j)),
                    pl.BlockSpec((1, tn), lambda i, j: (0, j))]
        out_spec = pl.BlockSpec((tm, tn), lambda i, j: (i, j))
        scratch = []
        sem = ("parallel", "parallel")
        if residual is not None:
            operands.append(residual)
            in_specs.append(pl.BlockSpec((tm, tn), lambda i, j: (i, j)))
            kernel = functools.partial(_mm_single_res_kernel, relu=relu)
        else:
            kernel = functools.partial(_mm_single_kernel, relu=relu)
    else:
        grid = (Mp // tm, N // tn, nk)
        in_specs = [pl.BlockSpec((tm, tk), lambda i, j, k: (i, k)),
                    pl.BlockSpec((tk, tn), lambda i, j, k: (k, j)),
                    pl.BlockSpec((1, tn), lambda i, j, k: (0, j)),
                    pl.BlockSpec((1, tn), lambda i, j, k: (0, j))]
        out_spec = pl.BlockSpec((tm, tn), lambda i, j, k: (i, j))
        scratch = [pltpu.VMEM((tm, tn), jnp.float32)]
        sem = ("parallel", "parallel", "arbitrary")
        if residual is not None:
            operands.append(residual)
            in_specs.append(pl.BlockSpec((tm, tn), lambda i, j, k: (i, j)))
            kernel = functools.partial(_mm_multi_res_kernel, relu=relu, nk=nk)
        else:
            kernel = functools.partial(_mm_multi_kernel, relu=relu, nk=nk)

    out = pl.pallas_call(
        kernel,
        out_shape=jax.ShapeDtypeStruct((Mp, N), out_dtype),
        grid_spec=pltpu.PrefetchScalarGridSpec(
            num_scalar_prefetch=0, grid=grid, in_specs=in_specs,
            out_specs=out_spec, scratch_shapes=scratch),
        compiler_params=pltpu.CompilerParams(
            dimension_semantics=sem, vmem_limit_bytes=_vmem_limit(est)),
    )(*operands)
    if Mp != M:
        out = out[:M]
    return out


# ----------------------------------------------------------------------------
# Pallas kernel 2: direct 3x3 stride-1 convolution (taps accumulated in-kernel)
#   No im2col matrix is materialized in HBM; the padded NHWC image (one
#   Cin-chunk) is a single resident block and the 9 tap matmuls accumulate
#   per output row.  Folded BN scale/shift (+ReLU) fused into the epilogue.
# ----------------------------------------------------------------------------
def _dconv_kernel(x_ref, w_ref, s_ref, t_ref, o_ref, *scratch, dil, relu, nk):
    H, W, _ = o_ref.shape

    def taps(h):
        acc = None
        for i in range(3):
            rowv = x_ref[h + i * dil]                       # [Wp, ck] bf16
            for j in range(3):
                lhs = rowv[j * dil:j * dil + W, :]          # [W, ck]
                p = jnp.dot(lhs, w_ref[i * 3 + j],
                            preferred_element_type=jnp.float32)
                acc = p if acc is None else acc + p
        return acc                                          # [W, tn] f32

    if nk == 1:
        def row_fn(h, carry):
            y = taps(h) * s_ref[...] + t_ref[...]
            if relu:
                y = jnp.maximum(y, 0.0)
            o_ref[h] = y.astype(o_ref.dtype)
            return carry

        lax.fori_loop(0, H, row_fn, 0)
    else:
        acc_ref = scratch[0]
        kc = pl.program_id(2)

        @pl.when(kc == 0)
        def _():
            acc_ref[...] = jnp.zeros(acc_ref.shape, acc_ref.dtype)

        def row_fn(h, carry):
            acc_ref[h] = acc_ref[h] + taps(h)
            return carry

        lax.fori_loop(0, H, row_fn, 0)

        @pl.when(kc == nk - 1)
        def _():
            y = acc_ref[...] * s_ref[...] + t_ref[...]
            if relu:
                y = jnp.maximum(y, 0.0)
            o_ref[...] = y.astype(o_ref.dtype)


def conv3x3_direct(x, w9, scale, shift, relu=True, dilation=1):
    """3x3, stride 1, padding == dilation.  x: [B,H,W,Cin] bf16,
    w9: [9, Cin, Cout] bf16 (tap-major)."""
    B, H, W, Cin = x.shape
    Cout = w9.shape[2]
    d = dilation
    xp = jnp.pad(x, ((0, 0), (d, d), (d, d), (0, 0)))
    Hp, Wp = H + 2 * d, W + 2 * d

    if Cin > 512:
        ck = _largest_divisor(Cin, 512, 128)
        if ck < 128:
            ck = Cin
    else:
        ck = Cin
    nk = Cin // ck
    tn = Cout if Cout <= 512 else _largest_divisor(Cout, 512, 128)
    nn = Cout // tn

    s2 = scale.reshape(1, Cout).astype(jnp.float32)
    t2 = shift.reshape(1, Cout).astype(jnp.float32)

    est = 2 * (Hp * Wp * ck * 2 + 9 * ck * tn * 2 + H * W * tn * 2)
    if nk > 1:
        est += H * W * tn * 4
    scratch = [pltpu.VMEM((H, W, tn), jnp.float32)] if nk > 1 else []
    kernel = functools.partial(_dconv_kernel, dil=d, relu=relu, nk=nk)

    # TODO(synk): add H-block tiling of the output for very large feature maps
    # (the whole per-image map is one resident block here).
    out = pl.pallas_call(
        kernel,
        out_shape=jax.ShapeDtypeStruct((B, H, W, Cout), jnp.bfloat16),
        grid_spec=pltpu.PrefetchScalarGridSpec(
            num_scalar_prefetch=0, grid=(B, nn, nk),
            in_specs=[
                pl.BlockSpec((None, Hp, Wp, ck), lambda b, n, kc: (b, 0, 0, kc)),
                pl.BlockSpec((9, ck, tn), lambda b, n, kc: (0, kc, n)),
                pl.BlockSpec((1, tn), lambda b, n, kc: (0, n)),
                pl.BlockSpec((1, tn), lambda b, n, kc: (0, n)),
            ],
            out_specs=pl.BlockSpec((None, H, W, tn), lambda b, n, kc: (b, 0, 0, n)),
            scratch_shapes=scratch),
        compiler_params=pltpu.CompilerParams(
            dimension_semantics=("parallel", "parallel", "arbitrary"),
            vmem_limit_bytes=_vmem_limit(est)),
    )(xp, w9, s2, t2)
    return out


# ----------------------------------------------------------------------------
# Convolutions lowered onto the kernels above
# ----------------------------------------------------------------------------
def conv1x1(x, wm, scale, shift, relu, stride=1, residual=None):
    """x: [B,H,W,Cin] bf16, wm: [Cin, Cout] bf16."""
    B, H, W, Cin = x.shape
    Cout = wm.shape[1]
    xs = x[:, ::stride, ::stride, :] if stride > 1 else x
    B, Ho, Wo, _ = xs.shape
    col = xs.reshape(B * Ho * Wo, Cin)
    res = residual.reshape(-1, Cout) if residual is not None else None
    out = matmul_scale_bias(col, wm, scale, shift, relu=relu, residual=res)
    return out.reshape(B, Ho, Wo, Cout)


def conv2d_im2col(x, wcol, scale, shift, relu, kh, kw, stride, padding,
                  dilation=1):
    """Strided convs (conv1 7x7/s2 and the three 3x3/s2 downsample convs).
    TODO(synk): these few strided convs still materialize an im2col matrix
    (amplification <= 9/4); stride-1 convs use the direct Pallas kernel."""
    B, H, W, Cin = x.shape
    K, Cout = wcol.shape                       # K already padded to mult of 8
    Ho = (H + 2 * padding - dilation * (kh - 1) - 1) // stride + 1
    Wo = (W + 2 * padding - dilation * (kw - 1) - 1) // stride + 1
    xp = jnp.pad(x, ((0, 0), (padding, padding), (padding, padding), (0, 0)))
    taps = []
    for i in range(kh):
        for j in range(kw):
            hi, wi = i * dilation, j * dilation
            patch = lax.slice(
                xp, (0, hi, wi, 0),
                (B, hi + (Ho - 1) * stride + 1, wi + (Wo - 1) * stride + 1, Cin),
                (1, stride, stride, 1))
            taps.append(patch)
    kpad = K - kh * kw * Cin
    if kpad:
        taps.append(jnp.zeros((B, Ho, Wo, kpad), x.dtype))
    col = jnp.concatenate(taps, axis=-1).reshape(B * Ho * Wo, K)
    out = matmul_scale_bias(col, wcol, scale, shift, relu=relu)
    return out.reshape(B, Ho, Wo, Cout)


def conv_transpose2d_subpixel(x, weff, bias4, relu=True):
    """ConvTranspose2d(Cin,Cout,3,s=2,p=1,op=1) as a sub-pixel conv."""
    B, H, W, Cin = x.shape
    Cout = weff.shape[1] // 4
    xp = jnp.pad(x, ((0, 0), (0, 1), (0, 1), (0, 0)))
    taps = [xp[:, di:di + H, dj:dj + W, :] for di in (0, 1) for dj in (0, 1)]
    col = jnp.concatenate(taps, axis=-1).reshape(B * H * W, 4 * Cin)
    ones = jnp.ones((4 * Cout,), jnp.float32)
    out = matmul_scale_bias(col, weff, ones, bias4, relu=relu)   # [B*H*W, 4*Cout]
    out = out.reshape(B, H, W, 2, 2, Cout).transpose(0, 1, 3, 2, 4, 5)
    return out.reshape(B, 2 * H, 2 * W, Cout)


def maxpool_3x3_s2_nhwc(x):
    # TODO(synk): max-pool kept as plain-JAX reduce_window (no Pallas kernel).
    neg_inf = jnp.asarray(-jnp.inf, dtype=x.dtype)
    return lax.reduce_window(x, neg_inf, lax.max, (1, 3, 3, 1), (1, 2, 2, 1),
                             padding=((0, 0), (1, 1), (1, 1), (0, 0)))


# ----------------------------------------------------------------------------
# Pallas kernel 3: fused classifier + prototype + cosine-sim / softmax head
#   Lane-dense [C, HW] outputs; one pass over the resident [HW, F] tile.
# ----------------------------------------------------------------------------
def _head_kernel(feat_ref, wc_ref, bc_ref,
                 logits_ref, proto_ref, sim_ref, wgt_ref, wmax_ref):
    feat_bf = feat_ref[0]                                   # [HW, F] bf16
    feat = feat_bf.astype(jnp.float32)
    wc = wc_ref[...]                                        # [C, F] bf16
    bc = bc_ref[...]                                        # [C, 1] f32

    # fused 1x1 classifier (logits kept lane-dense, classes on sublanes)
    logits = lax.dot_general(wc, feat_bf, (((1,), (1,)), ((), ())),
                             preferred_element_type=jnp.float32) + bc
    logits_ref[0] = logits                                  # [C, HW]
    C, HW = logits.shape

    # pseudo-label argmax -> one-hot mask (first max wins, like torch.argmax)
    m = jnp.max(logits, axis=0, keepdims=True)              # [1, HW]
    iota_c = lax.broadcasted_iota(jnp.int32, (C, HW), 0)
    first = jnp.min(jnp.where(logits == m, iota_c, C), axis=0, keepdims=True)
    onehot = (iota_c == first).astype(jnp.float32)          # [C, HW]

    # per-class masked mean (bf16 MXU operands, f32 accumulation)
    counts = jnp.sum(onehot, axis=1, keepdims=True)         # [C, 1]
    sums = jnp.dot(onehot.astype(jnp.bfloat16), feat_bf,
                   preferred_element_type=jnp.float32)      # [C, F]
    proto = sums / (counts + 1e-5)
    proto_ref[0] = proto

    # cosine similarity (normalization in f32, contraction in bf16)
    fn = feat * lax.rsqrt(jnp.maximum(
        jnp.sum(feat * feat, axis=1, keepdims=True), 1e-24))
    pn = proto * lax.rsqrt(jnp.maximum(
        jnp.sum(proto * proto, axis=1, keepdims=True), 1e-24))
    sim = lax.dot_general(pn.astype(jnp.bfloat16), fn.astype(jnp.bfloat16),
                          (((1,), (1,)), ((), ())),
                          preferred_element_type=jnp.float32)   # [C, HW]
    sim_ref[0] = sim

    # softmax over classes (exact reciprocal for parity with torch)
    e = jnp.exp(sim - jnp.max(sim, axis=0, keepdims=True))
    wgt = e / jnp.sum(e, axis=0, keepdims=True)
    wgt_ref[0] = wgt
    wmax_ref[0] = jnp.max(wgt, axis=0, keepdims=True)        # [1, HW]


def fused_head(feat_hwf, cls_wt, cls_b):
    """feat: [B, HW, F] bf16; cls_wt: [C, F] bf16; cls_b: [C, 1] f32."""
    # TODO(synk): tile the HW axis (two-pass proto/sim) for very large feature
    # maps to stay under v7x's 64 MiB VMEM; fine at these resolutions.
    B, HW, F = feat_hwf.shape
    C = cls_wt.shape[0]
    return pl.pallas_call(
        _head_kernel,
        out_shape=(jax.ShapeDtypeStruct((B, C, HW), jnp.float32),
                   jax.ShapeDtypeStruct((B, C, F), jnp.float32),
                   jax.ShapeDtypeStruct((B, C, HW), jnp.float32),
                   jax.ShapeDtypeStruct((B, C, HW), jnp.float32),
                   jax.ShapeDtypeStruct((B, 1, HW), jnp.float32)),
        grid_spec=pltpu.PrefetchScalarGridSpec(
            num_scalar_prefetch=0, grid=(B,),
            in_specs=[pl.BlockSpec((1, HW, F), lambda b: (b, 0, 0)),
                      pl.BlockSpec((C, F), lambda b: (0, 0)),
                      pl.BlockSpec((C, 1), lambda b: (0, 0))],
            out_specs=[pl.BlockSpec((1, C, HW), lambda b: (b, 0, 0)),
                       pl.BlockSpec((1, C, F), lambda b: (b, 0, 0)),
                       pl.BlockSpec((1, C, HW), lambda b: (b, 0, 0)),
                       pl.BlockSpec((1, C, HW), lambda b: (b, 0, 0)),
                       pl.BlockSpec((1, 1, HW), lambda b: (b, 0, 0))]),
        compiler_params=pltpu.CompilerParams(dimension_semantics=("parallel",)),
    )(feat_hwf, cls_wt, cls_b)


# ----------------------------------------------------------------------------
# Bilinear interpolation (align_corners=True), glue
# ----------------------------------------------------------------------------
def _interp_weights(in_size, out_size):
    if in_size == 1:
        return jnp.ones((out_size, 1), jnp.float32)
    scale = (in_size - 1) / max(out_size - 1, 1)
    pos = jnp.arange(out_size, dtype=jnp.float32) * scale
    lo = jnp.clip(jnp.floor(pos).astype(jnp.int32), 0, in_size - 1)
    hi = jnp.clip(lo + 1, 0, in_size - 1)
    frac = pos - lo.astype(jnp.float32)
    r = jnp.arange(out_size)
    wmat = jnp.zeros((out_size, in_size), jnp.float32)
    wmat = wmat.at[r, lo].add(1.0 - frac)
    wmat = wmat.at[r, hi].add(frac)
    return wmat


def bilinear_align_corners(x, out_h, out_w):
    # TODO(synk): bilinear resize kept as plain-JAX glue (separable matmuls).
    wr = _interp_weights(x.shape[2], out_h)
    wc = _interp_weights(x.shape[3], out_w)
    return jnp.einsum('oh,bchw,pw->bcop', wr, x, wc)


# ----------------------------------------------------------------------------
# Deterministic parameter initialization (synthetic; no checkpoint).
# Weights are pre-laid-out / pre-cast to the kernel dtypes once at init.
# ----------------------------------------------------------------------------
class ParamGen:
    def __init__(self, seed):
        self.key = jax.random.PRNGKey(seed)
        self.i = 0

    def next(self):
        self.i += 1
        return jax.random.fold_in(self.key, self.i)

    def conv(self, cout, cin, kh, kw):
        fan_in = cin * kh * kw
        return (jax.random.normal(self.next(), (cout, cin, kh, kw))
                * (2.0 / fan_in) ** 0.5).astype(jnp.float32)

    def vec(self, n, scale=0.05):
        return (scale * jax.random.normal(self.next(), (n,))).astype(jnp.float32)


def fold_bn(pg, c):
    """Inference-mode BN folded to per-channel (scale, shift), f32."""
    gamma = 1.0 + 0.1 * jax.random.normal(pg.next(), (c,))
    beta = 0.05 * jax.random.normal(pg.next(), (c,))
    mean = 0.05 * jax.random.normal(pg.next(), (c,))
    var = 1.0 + 0.1 * jax.random.uniform(pg.next(), (c,))
    scale = (gamma / jnp.sqrt(var + 1e-5)).astype(jnp.float32)
    shift = (beta - mean * scale).astype(jnp.float32)
    return scale, shift


def prep_1x1(w):                               # [Cout, Cin, 1, 1] -> [Cin, Cout]
    cout, cin = w.shape[:2]
    return jnp.transpose(w.reshape(cout, cin)).astype(jnp.bfloat16)


def prep_direct3x3(w):                         # [Cout, Cin, 3, 3] -> [9, Cin, Cout]
    cout, cin = w.shape[:2]
    return jnp.transpose(w, (2, 3, 1, 0)).reshape(9, cin, cout).astype(jnp.bfloat16)


def prep_im2col(w):                            # [Cout, Cin, kh, kw] -> [Kpad, Cout]
    cout, cin, kh, kw = w.shape
    wm = jnp.transpose(w, (2, 3, 1, 0)).reshape(kh * kw * cin, cout)
    k = kh * kw * cin
    kp = _round_up(k, 8)
    if kp != k:
        wm = jnp.pad(wm, ((0, kp - k), (0, 0)))
    return wm.astype(jnp.bfloat16)


def prep_subpixel(w):                          # w: [Cin, Cout, 3, 3] (ConvT layout)
    cin, cout = w.shape[:2]
    kmap = {(0, 0): 1, (1, 0): 2, (1, 1): 0}
    weff = jnp.zeros((2, 2, cin, 2, 2, cout), jnp.float32)
    for rh in (0, 1):
        for di in (0, 1):
            ki = kmap.get((rh, di))
            if ki is None:
                continue
            for rw in (0, 1):
                for dj in (0, 1):
                    kj = kmap.get((rw, dj))
                    if kj is None:
                        continue
                    weff = weff.at[di, dj, :, rh, rw, :].set(w[:, :, ki, kj])
    return weff.reshape(4 * cin, 4 * cout).astype(jnp.bfloat16)


def make_bottleneck(pg, cin, width, stride):
    p = {'stride': stride,
         'c1': prep_1x1(pg.conv(width, cin, 1, 1)), 'bn1': fold_bn(pg, width)}
    w2 = pg.conv(width, width, 3, 3)
    p['c2'] = prep_direct3x3(w2) if stride == 1 else prep_im2col(w2)
    p['bn2'] = fold_bn(pg, width)
    p['c3'] = prep_1x1(pg.conv(width * 4, width, 1, 1))
    p['bn3'] = fold_bn(pg, width * 4)
    if stride != 1 or cin != width * 4:
        p['cd'] = prep_1x1(pg.conv(width * 4, cin, 1, 1))
        p['bnd'] = fold_bn(pg, width * 4)
    return p


def make_layer(pg, cin, width, blocks, stride):
    layer = [make_bottleneck(pg, cin, width, stride)]
    for _ in range(blocks - 1):
        layer.append(make_bottleneck(pg, width * 4, width, 1))
    return layer


def init_params(num_classes=21, feat_dim=128, seed=0):
    pg = ParamGen(seed)
    P = {}
    # ResNet-50 backbone
    P['conv1'] = {'wcol': prep_im2col(pg.conv(64, 3, 7, 7)), 'bn': fold_bn(pg, 64)}
    P['layer1'] = make_layer(pg, 64, 64, 3, 1)
    P['layer2'] = make_layer(pg, 256, 128, 4, 2)
    P['layer3'] = make_layer(pg, 512, 256, 6, 2)
    P['layer4'] = make_layer(pg, 1024, 512, 3, 2)
    # ASPP (in=2048, out=256, rates 6/12/18) with source/target BN
    P['aspp_convs'] = []
    for rate in (6, 12, 18):
        P['aspp_convs'].append({'rate': rate,
                                'w9': prep_direct3x3(pg.conv(256, 2048, 3, 3)),
                                'bn_src': fold_bn(pg, 256),
                                'bn_tgt': fold_bn(pg, 256)})
    P['aspp_pool'] = {'wm': prep_1x1(pg.conv(256, 2048, 1, 1)),
                      'bn_src': fold_bn(pg, 256), 'bn_tgt': fold_bn(pg, 256)}
    P['aspp_proj'] = {'wm': prep_1x1(pg.conv(256, 4 * 256, 1, 1)),
                      'bn_src': fold_bn(pg, 256), 'bn_tgt': fold_bn(pg, 256)}
    # asppconv: ConvTranspose2d(256, featDim, 3, s=2, p=1, op=1) + ReLU
    P['ct'] = {'weff': prep_subpixel(pg.conv(256, feat_dim, 3, 3)),
               'bias4': jnp.tile(pg.vec(feat_dim), 4).astype(jnp.float32)}
    # classifier: Conv2d(featDim, num_classes, 1), fused into the head kernel
    cls_w = pg.conv(num_classes, feat_dim, 1, 1)
    P['cls'] = {'wt': cls_w.reshape(num_classes, feat_dim).astype(jnp.bfloat16),
                'b': pg.vec(num_classes).reshape(num_classes, 1).astype(jnp.float32)}
    # NOTE: per-class a_i / b_i parameters exist in __init__ but are unused in
    # forward, so they are omitted here.
    return P


# ----------------------------------------------------------------------------
# Forward pass
# ----------------------------------------------------------------------------
def bottleneck(x, p):
    out = conv1x1(x, p['c1'], *p['bn1'], relu=True)
    if p['stride'] == 1:
        out = conv3x3_direct(out, p['c2'], *p['bn2'], relu=True, dilation=1)
    else:
        out = conv2d_im2col(out, p['c2'], *p['bn2'], relu=True,
                            kh=3, kw=3, stride=p['stride'], padding=1)
    if 'cd' in p:
        sc = conv1x1(x, p['cd'], *p['bnd'], relu=False, stride=p['stride'])
    else:
        sc = x
    # residual add + final ReLU fused into the third 1x1 conv's epilogue
    return conv1x1(out, p['c3'], *p['bn3'], relu=True, residual=sc)


def forward(P, x, domain_label=0, get_p_flag=False):
    # TODO(synk): maskParam / ProtoInput alternate branches not exercised here.
    h, w = x.shape[2], x.shape[3]
    dom = 'bn_src' if domain_label == 0 else 'bn_tgt'
    xh = jnp.transpose(x, (0, 2, 3, 1)).astype(jnp.bfloat16)   # NCHW->NHWC bf16

    # --- ResNet-50 backbone ---
    y = conv2d_im2col(xh, P['conv1']['wcol'], *P['conv1']['bn'], relu=True,
                      kh=7, kw=7, stride=2, padding=3)
    y = maxpool_3x3_s2_nhwc(y)
    for name in ('layer1', 'layer2', 'layer3', 'layer4'):
        for blk in P[name]:
            y = bottleneck(y, blk)
    x4 = y                                                      # [B,hs,ws,2048]
    B, hs, ws, _ = x4.shape

    # --- ASPP (dilated 3x3 convs run on the direct Pallas conv kernel) ---
    branches = []
    for br in P['aspp_convs']:
        branches.append(conv3x3_direct(x4, br['w9'], *br[dom], relu=True,
                                       dilation=br['rate']))
    # global-pool branch: tiny [B, 2048] matmul -> plain jnp.dot, no Pallas launch
    pb = P['aspp_pool']
    ps, pt = pb[dom]
    pooled = jnp.mean(x4.astype(jnp.float32), axis=(1, 2))      # [B, 2048]
    pool_out = jnp.dot(pooled.astype(jnp.bfloat16), pb['wm'],
                       preferred_element_type=jnp.float32) * ps + pt
    pool_out = jnp.maximum(pool_out, 0.0).astype(jnp.bfloat16)
    # bilinear upsample of a 1x1 map is a constant broadcast
    pool_out = jnp.broadcast_to(pool_out[:, None, None, :],
                                (B, hs, ws, pool_out.shape[-1]))
    branches.append(pool_out)
    cat = jnp.concatenate(branches, axis=-1)                    # [B,hs,ws,1024]
    pj = P['aspp_proj']
    aspp_out = conv1x1(cat, pj['wm'], *pj[dom], relu=True)      # [B,hs,ws,256]

    # --- asppconv (ConvTranspose2d + ReLU) as sub-pixel conv ---
    feat = conv_transpose2d_subpixel(aspp_out, P['ct']['weff'], P['ct']['bias4'],
                                     relu=True)                 # [B,2hs,2ws,128]
    if get_p_flag:
        return jnp.transpose(feat, (0, 3, 1, 2)).astype(jnp.float32)

    # --- fused classifier + prototype + cosine/softmax head (one Pallas call)
    B, Hf, Wf, F = feat.shape
    HW = Hf * Wf
    feat_hwf = feat.reshape(B, HW, F)
    logits_chw, protos, sim_chw, wgt_chw, wmax_1hw = fused_head(
        feat_hwf, P['cls']['wt'], P['cls']['b'])

    logits_nchw = logits_chw.reshape(B, -1, Hf, Wf)
    sim = sim_chw.reshape(B, -1, Hf, Wf)
    wgt = wgt_chw.reshape(B, -1, Hf, Wf)
    wmax = wmax_1hw.reshape(B, Hf, Wf)
    feat_nchw = jnp.transpose(feat, (0, 3, 1, 2)).astype(jnp.float32)
    featw = feat_nchw * wmax[:, None, :, :]
    prototypes5 = protos[..., None, None]                       # [B,C,F,1,1]
    query = protos[..., None, None]

    xup = bilinear_align_corners(logits_nchw, h // 4, w // 4)

    return ({'out': logits_nchw, 'outUp': xup},
            {'CurrentPorotype': None, 'GetProto': prototypes5, 'query': query},
            {'asspF': feat_nchw, 'asspFW': featw, 'cat': sim,
             'Weight': [wgt, wmax]})


# ----------------------------------------------------------------------------
if __name__ == "__main__":
    num_classes = 21
    key = jax.random.PRNGKey(0)
    x = jax.random.normal(key, (2, 3, 64, 64), jnp.float32)   # small NCHW input

    params = init_params(num_classes=num_classes, feat_dim=128, seed=0)
    outs = forward(params, x, domain_label=0)
    outs = jax.block_until_ready(outs)

    out_d, proto_d, aux_d = outs
    assert out_d['out'].shape == (2, num_classes, 4, 4)
    assert out_d['outUp'].shape == (2, num_classes, 16, 16)
    assert proto_d['GetProto'].shape == (2, num_classes, 128, 1, 1)
    assert aux_d['asspF'].shape == (2, 128, 4, 4)
    assert aux_d['asspFW'].shape == (2, 128, 4, 4)
    assert aux_d['cat'].shape == (2, num_classes, 4, 4)
    assert aux_d['Weight'][0].shape == (2, num_classes, 4, 4)
    assert aux_d['Weight'][1].shape == (2, 4, 4)
    print("KERNEL_OK")
</pallas_src>

<mosaic_0001>
module attributes {stable_mosaic.version = 11 : i64} {
  func.func @_mm_single_kernel(%arg0: i32, %arg1: i32, %arg2: memref<512x152xbf16, #tpu.memory_space<vmem>>, %arg3: memref<152x64xbf16, #tpu.memory_space<vmem>>, %arg4: memref<1x64xf32, #tpu.memory_space<vmem>>, %arg5: memref<1x64xf32, #tpu.memory_space<vmem>>, %arg6: memref<512x64xbf16, #tpu.memory_space<vmem>>) attributes {dimension_semantics = [#tpu.dimension_semantics<parallel>, #tpu.dimension_semantics<parallel>], iteration_bounds = array<i64: 4, 1>, scalar_prefetch = 0 : i64, scratch_operands = 0 : i64, tpu.core_type = #tpu.core_type<tc>, window_params = [{transform_indices = @transform_0, window_bounds = array<i64: 512, 152>}, {transform_indices = @transform_1, window_bounds = array<i64: 152, 64>}, {transform_indices = @transform_2, window_bounds = array<i64: 1, 64>}, {transform_indices = @transform_3, window_bounds = array<i64: 1, 64>}, {transform_indices = @transform_4, window_bounds = array<i64: 512, 64>}]} {
    %c0 = arith.constant 0 : index
    %c0_0 = arith.constant 0 : index
    %0 = vector.load %arg2[%c0, %c0_0] : memref<512x152xbf16, #tpu.memory_space<vmem>>, vector<512x152xbf16>
    %c0_1 = arith.constant 0 : index
    %c0_2 = arith.constant 0 : index
    %1 = vector.load %arg3[%c0_1, %c0_2] : memref<152x64xbf16, #tpu.memory_space<vmem>>, vector<152x64xbf16>
    %cst = arith.constant dense<0.000000e+00> : vector<512x64xf32>
    %2 = tpu.matmul %0, %1, %cst {dimension_numbers = #tpu.dot_dimension_numbers<[1], [0], [0], [1], [0, 0, 1, 1], [], []>} : vector<512x152xbf16>, vector<152x64xbf16>, vector<512x64xf32> -> vector<512x64xf32>
    %c0_3 = arith.constant 0 : index
    %c0_4 = arith.constant 0 : index
    %3 = vector.load %arg4[%c0_3, %c0_4] : memref<1x64xf32, #tpu.memory_space<vmem>>, vector<1x64xf32>
    %4 = vector.broadcast %3 : vector<1x64xf32> to vector<512x64xf32>
    %5 = arith.mulf %2, %4 : vector<512x64xf32>
    %c0_5 = arith.constant 0 : index
    %c0_6 = arith.constant 0 : index
    %6 = vector.load %arg5[%c0_5, %c0_6] : memref<1x64xf32, #tpu.memory_space<vmem>>, vector<1x64xf32>
    %7 = vector.broadcast %6 : vector<1x64xf32> to vector<512x64xf32>
    %8 = arith.addf %5, %7 : vector<512x64xf32>
    %cst_7 = arith.constant 0.000000e+00 : f32
    %9 = vector.broadcast %cst_7 : f32 to vector<512x64xf32>
    %10 = arith.maximumf %8, %9 : vector<512x64xf32>
    %11 = arith.truncf %10 : vector<512x64xf32> to vector<512x64xbf16>
    %c0_8 = arith.constant 0 : index
    %c0_9 = arith.constant 0 : index
    %12 = vector.load %arg6[%c0_8, %c0_9] : memref<512x64xbf16, #tpu.memory_space<vmem>>, vector<512x64xbf16>
    tpu.vector_store %arg6[%c0_8, %c0_9], %11 {strides = array<i32>} : memref<512x64xbf16, #tpu.memory_space<vmem>>, vector<512x64xbf16>,
    return
  }
  func.func @transform_0(%arg0: i32, %arg1: i32) -> (i32, i32) {
    %c0_i32 = arith.constant 0 : i32
    %c0_i32_0 = arith.constant 0 : i32
    return %arg0, %c0_i32 : i32, i32
  }
  func.func @transform_1(%arg0: i32, %arg1: i32) -> (i32, i32) {
    %c0_i32 = arith.constant 0 : i32
    %c0_i32_0 = arith.constant 0 : i32
    return %c0_i32, %arg1 : i32, i32
  }
  func.func @transform_2(%arg0: i32, %arg1: i32) -> (i32, i32) {
    %c0_i32 = arith.constant 0 : i32
    %c0_i32_0 = arith.constant 0 : i32
    return %c0_i32, %arg1 : i32, i32
  }
  func.func @transform_3(%arg0: i32, %arg1: i32) -> (i32, i32) {
    %c0_i32 = arith.constant 0 : i32
    %c0_i32_0 = arith.constant 0 : i32
    return %c0_i32, %arg1 : i32, i32
  }
  func.func @transform_4(%arg0: i32, %arg1: i32) -> (i32, i32) {
    %c0_i32 = arith.constant 0 : i32
    return %arg0, %arg1 : i32, i32
  }
}

</mosaic_0001>

<llo_original>
// kernel: tpu_custom_call.1
$region0: #{tpu_custom_call.1}
  #allocation0 [shape = 'u32[]', space=smem, size = 0x4, offset = 0x4, fixed_abs, tag = 'smem constant byte address 0x4 - core index']
  #allocation1 [shape = 'u32[144,128]{1,0:T(1,128)}', space=vmem, size = 0x12000, scoped, tag = 'internal scratch']
  %s0 = inlined_call_operand.vmem [shape: bf16[2048,152], index: 0, kind: input, shape index: {}]
  %s1 = inlined_call_operand.vmem [shape: bf16[152,64], index: 1, kind: input, shape index: {}]
  %s2 = inlined_call_operand.vmem [shape: f32[1,64], index: 2, kind: input, shape index: {}]
  %s3 = inlined_call_operand.vmem [shape: f32[1,64], index: 3, kind: input, shape index: {}]
  %s4 = inlined_call_operand.vmem [shape: bf16[2048,64], index: 4, kind: output, shape index: {}]
  %s5 = sld [smem:[#allocation0]]
  $region49: #{tpu_custom_call.1} parent=0
    _
  %s7 = ssub.s32 1, %s5
  %s8 = scalar_select 0, %s7, %s5
  loop: start=0, step=1, limit=6
  $region2: #{tpu_custom_call.1} parent=0 // loop_pre_header
    _
  $region3: #{tpu_custom_call.1} parent=0 // loop_header
    %s10 = sphi 0, %s14
    %p11 = scmp.ge.s32.totalorder %s10, 6
    %s17 = sphi 0, %s29
    %s18 = sphi 0, %s25
    %s19 = sphi 0, %s17
    %s20 = sphi 0, %s18
    %s21 = sphi 0, %s19
    %s22 = sphi 0, %s20
    %s32 = sphi 0, %s34
    %s35 = sphi 0, %s32
    %s36 = sphi 0, %s35
    %s52 = sphi 0, %s36
    %s58 = sphi 0, %s60
    %s61 = sphi 0, %s58
    %s62 = sphi 0, %s61
    %s78 = sphi 0, %s62
    %s84 = sphi 0, %s86
    %s87 = sphi 0, %s84
    %s88 = sphi 0, %s87
    %s104 = sphi 0, %s88
    %s110 = sphi 0, %s112
    %s113 = sphi 0, %s110
    %s114 = sphi 0, %s113
    %s130 = sphi 0, %s114
    %s138 = sphi 0, %s140
    %s141 = sphi 0, %s138
    %s142 = sphi 0, %s141
    %s158 = sphi 0, %s142
  $region4: #{tpu_custom_call.1} parent=0 // loop_header_branch
    %13 = sbr.rel (%p11) target = $region8
  $region5: #{tpu_custom_call.1} parent=0 // loop_body
    %s15 = ssub.s32 %s10, 1
    %s16 = ssub.s32 %s10, 2
    %s23 = sadd.s32 1, %s18
    %p24 = scmp.ge.s32.totalorder %s23, 1
    %s25 = scalar_select %p24, 0, %s23
    %s26 = sadd.s32 1, %s17
    %s27 = scalar_select %p24, %s26, %s17
    %p28 = scmp.ge.s32.totalorder %s27, 4
    %s29 = scalar_select %p28, 0, %s27
    %s30 = ssub.s32 %s17, %s29
    %p31 = scmp.eq.s32.totalorder %s30, 0
    %s33 = sadd.s32 %s32, 1
    %s34 = scalar_select %p31, %s32, %s33
    %p37 = pneg %p31
    %p38 = scmp.eq.s32.totalorder %s10, 3
    %p39 = por %p37, %p38
    %p40 = scmp.ne.s32.totalorder %s32, %s35
    %p41 = scmp.eq.s32.totalorder %s10, 0
    %p42 = por %p40, %p41
    %p43 = scmp.ne.s32.totalorder %s32, %s35
    %p44 = scmp.eq.s32.totalorder %s15, 3
    %p45 = por %p43, %p44
    %p46 = scmp.ne.s32.totalorder %s35, %s36
    %p47 = scmp.eq.s32.totalorder %s15, 0
    %p48 = por %p46, %p47
    %p49 = scmp.ne.s32.totalorder %s35, %s36
    %p50 = scmp.eq.s32.totalorder %s16, 3
    %p51 = por %p49, %p50
    %p53 = scmp.ne.s32.totalorder %s36, %s52
    %p54 = scmp.eq.s32.totalorder %s16, 0
    %p55 = por %p53, %p54
    %s56 = ssub.s32 %s18, %s25
    %p57 = scmp.eq.s32.totalorder %s56, 0
    %s59 = sadd.s32 %s58, 1
    %s60 = scalar_select %p57, %s58, %s59
    %p63 = pneg %p57
    %p64 = scmp.eq.s32.totalorder %s10, 3
    %p65 = por %p63, %p64
    %p66 = scmp.ne.s32.totalorder %s58, %s61
    %p67 = scmp.eq.s32.totalorder %s10, 0
    %p68 = por %p66, %p67
    %p69 = scmp.ne.s32.totalorder %s58, %s61
    %p70 = scmp.eq.s32.totalorder %s15, 3
    %p71 = por %p69, %p70
    %p72 = scmp.ne.s32.totalorder %s61, %s62
    %p73 = scmp.eq.s32.totalorder %s15, 0
    %p74 = por %p72, %p73
    %p75 = scmp.ne.s32.totalorder %s61, %s62
    %p76 = scmp.eq.s32.totalorder %s16, 3
    %p77 = por %p75, %p76
    %p79 = scmp.ne.s32.totalorder %s62, %s78
    %p80 = scmp.eq.s32.totalorder %s16, 0
    %p81 = por %p79, %p80
    %s82 = ssub.s32 %s18, %s25
    %p83 = scmp.eq.s32.totalorder %s82, 0
    %s85 = sadd.s32 %s84, 1
    %s86 = scalar_select %p83, %s84, %s85
    %p89 = pneg %p83
    %p90 = scmp.eq.s32.totalorder %s10, 3
    %p91 = por %p89, %p90
    %p92 = scmp.ne.s32.totalorder %s84, %s87
    %p93 = scmp.eq.s32.totalorder %s10, 0
    %p94 = por %p92, %p93
    %p95 = scmp.ne.s32.totalorder %s84, %s87
    %p96 = scmp.eq.s32.totalorder %s15, 3
    %p97 = por %p95, %p96
    %p98 = scmp.ne.s32.totalorder %s87, %s88
    %p99 = scmp.eq.s32.totalorder %s15, 0
    %p100 = por %p98, %p99
    %p101 = scmp.ne.s32.totalorder %s87, %s88
    %p102 = scmp.eq.s32.totalorder %s16, 3
    %p103 = por %p101, %p102
    %p105 = scmp.ne.s32.totalorder %s88, %s104
    %p106 = scmp.eq.s32.totalorder %s16, 0
    %p107 = por %p105, %p106
    %s108 = ssub.s32 %s18, %s25
    %p109 = scmp.eq.s32.totalorder %s108, 0
    %s111 = sadd.s32 %s110, 1
    %s112 = scalar_select %p109, %s110, %s111
    %p115 = pneg %p109
    %p116 = scmp.eq.s32.totalorder %s10, 3
    %p117 = por %p115, %p116
    %p118 = scmp.ne.s32.totalorder %s110, %s113
    %p119 = scmp.eq.s32.totalorder %s10, 0
    %p120 = por %p118, %p119
    %p121 = scmp.ne.s32.totalorder %s110, %s113
    %p122 = scmp.eq.s32.totalorder %s15, 3
    %p123 = por %p121, %p122
    %p124 = scmp.ne.s32.totalorder %s113, %s114
    %p125 = scmp.eq.s32.totalorder %s15, 0
    %p126 = por %p124, %p125
    %p127 = scmp.ne.s32.totalorder %s113, %s114
    %p128 = scmp.eq.s32.totalorder %s16, 3
    %p129 = por %p127, %p128
    %p131 = scmp.ne.s32.totalorder %s114, %s130
    %p132 = scmp.eq.s32.totalorder %s16, 0
    %p133 = por %p131, %p132
    %s134 = ssub.s32 %s17, %s29
    %s135 = ssub.s32 %s18, %s25
    %s136 = sor.u32 %s134, %s135
    %p137 = scmp.eq.s32.totalorder %s136, 0
    %s139 = sadd.s32 %s138, 1
    %s140 = scalar_select %p137, %s138, %s139
    %p143 = pneg %p137
    %p144 = scmp.eq.s32.totalorder %s10, 3
    %p145 = por %p143, %p144
    %p146 = scmp.ne.s32.totalorder %s138, %s141
    %p147 = scmp.eq.s32.totalorder %s10, 0
    %p148 = por %p146, %p147
    %p149 = scmp.ne.s32.totalorder %s138, %s141
    %p150 = scmp.eq.s32.totalorder %s15, 3
    %p151 = por %p149, %p150
    %p152 = scmp.ne.s32.totalorder %s141, %s142
    %p153 = scmp.eq.s32.totalorder %s15, 0
    %p154 = por %p152, %p153
    %p155 = scmp.ne.s32.totalorder %s141, %s142
    %p156 = scmp.eq.s32.totalorder %s16, 3
    %p157 = por %p155, %p156
    %p159 = scmp.ne.s32.totalorder %s142, %s158
    %p160 = scmp.eq.s32.totalorder %s16, 0
    %p161 = por %p159, %p160
    %p162 = scmp.le.s32.totalorder 1, %s10
    %p163 = scmp.lt.s32.totalorder %s10, 5
    %p164 = pnand %p162, %p163
    %p165 = pneg %p164
    // Predicated region
    $region9: #{tpu_custom_call.1} parent=5 // pred_check
      _
    $region10: #{tpu_custom_call.1} parent=5 // pred_check_branch
      %167 = sbr.rel (%p164) target = $region12
    $region11: #{tpu_custom_call.1} parent=5 // pred_region
      %s168 = ssub.s32 %s10, 1
      // Predicated region
      $region13: #{tpu_custom_call.1} parent=11 // pred_check
        %p169 = pneg %p74
      $region14: #{tpu_custom_call.1} parent=11 // pred_check_branch
        %171 = sbr.rel (%p169) target = $region16
      $region15: #{tpu_custom_call.1} parent=11 // pred_region
        %p172 = scmp.lt.s32.totalorder %s20, 0
        %s173 = scalar_select %p172, %s20, 0
        %s174 = smul.addr %s173, 4
        %s175 = scalar_lea.vmem %s1, %s174
      $region16: #{tpu_custom_call.1} parent=11 // pred_fallthru
        _
      // Predicated region
      $region17: #{tpu_custom_call.1} parent=11 // pred_check
        %p176 = pneg %p100
      $region18: #{tpu_custom_call.1} parent=11 // pred_check_branch
        %178 = sbr.rel (%p176) target = $region20
      $region19: #{tpu_custom_call.1} parent=11 // pred_region
        %p179 = scmp.lt.s32.totalorder %s20, 0
        %s180 = scalar_select %p179, %s20, 0
        %s181 = scalar_lea.vmem %s2, %s180
      $region20: #{tpu_custom_call.1} parent=11 // pred_fallthru
        _
      // Predicated region
      $region21: #{tpu_custom_call.1} parent=11 // pred_check
        %p182 = pneg %p126
      $region22: #{tpu_custom_call.1} parent=11 // pred_check_branch
        %184 = sbr.rel (%p182) target = $region24
      $region23: #{tpu_custom_call.1} parent=11 // pred_region
        %p185 = scmp.lt.s32.totalorder %s20, 0
        %s186 = scalar_select %p185, %s20, 0
        %s187 = scalar_lea.vmem %s3, %s186
      $region24: #{tpu_custom_call.1} parent=11 // pred_fallthru
        _
    $region12: #{tpu_custom_call.1} parent=5 // pred_fallthru
      _
    %p188 = scmp.lt.s32.totalorder %s10, 4
    // Predicated region
    $region25: #{tpu_custom_call.1} parent=5 // pred_check
      %p189 = pneg %p188
    $region26: #{tpu_custom_call.1} parent=5 // pred_check_branch
      %191 = sbr.rel (%p189) target = $region28
    $region27: #{tpu_custom_call.1} parent=5 // pred_region
      // Predicated region
      $region29: #{tpu_custom_call.1} parent=27 // pred_check
        %p192 = pneg %p42
      $region30: #{tpu_custom_call.1} parent=27 // pred_check_branch
        %194 = sbr.rel (%p192) target = $region32
      $region31: #{tpu_custom_call.1} parent=27 // pred_region
        %s195 = smul.u32 64, %s17
        %p196 = scmp.lt.s32.totalorder %s195, 255
        %s197 = scalar_select %p196, %s195, 255
        %s198 = smul.addr %s197, 2
        %s199 = smul.addr %s198, 4
        %s200 = scalar_lea.vmem %s0, %s199
        %s201 = smul.u32 64, %s17
      $region32: #{tpu_custom_call.1} parent=27 // pred_fallthru
        _
    $region28: #{tpu_custom_call.1} parent=5 // pred_fallthru
      _
    %p202 = scmp.le.s32.totalorder 1, %s10
    %p203 = scmp.lt.s32.totalorder %s10, 5
    %p204 = pnand %p202, %p203
    %p205 = pneg %p204
    // Predicated region
    $region33: #{tpu_custom_call.1} parent=5 // pred_check
      _
    $region34: #{tpu_custom_call.1} parent=5 // pred_check_branch
      %207 = sbr.rel (%p204) target = $region36
    $region35: #{tpu_custom_call.1} parent=5 // pred_region
      %s208 = ssub.s32 %s10, 1
      %s209 = smul.u32 64, %s19
      %p210 = scmp.lt.s32.totalorder %s209, 255
      %s211 = scalar_select %p210, %s209, 255
      %s212 = smul.addr %s211, 2
      %s213 = smul.addr %s212, 4
      %s214 = scalar_lea.vmem %s0, %s213
      %p215 = pneg %p48
      %p216 = pneg %p45
      %p217 = scmp.lt.s32.totalorder %s20, 0
      %s218 = scalar_select %p217, %s20, 0
      %s219 = smul.addr %s218, 4
      %s220 = scalar_lea.vmem %s1, %s219
      %p221 = pneg %p74
      %p222 = pneg %p71
      %p223 = scmp.lt.s32.totalorder %s20, 0
      %s224 = scalar_select %p223, %s20, 0
      %s225 = scalar_lea.vmem %s2, %s224
      %p226 = pneg %p100
      %p227 = pneg %p97
      %p228 = scmp.lt.s32.totalorder %s20, 0
      %s229 = scalar_select %p228, %s20, 0
      %s230 = scalar_lea.vmem %s3, %s229
      %p231 = pneg %p126
      %p232 = pneg %p123
      %p233 = pneg %p154
      %p234 = pneg %p151
      %s235 = smul.u32 64, %s19
      %p236 = scmp.lt.s32.totalorder %s235, 255
      %s237 = scalar_select %p236, %s235, 255
      %p238 = scmp.lt.s32.totalorder %s20, 0
      %s239 = scalar_select %p238, %s20, 0
      %s240 = sadd.s32 %s239, %s237
      %s241 = smul.addr %s240, 4
      %s242 = scalar_lea.vmem %s4, %s241
      %s243 = smul.u32 64, %s19
      %p244 = scmp.lt.s32.totalorder %s243, 255
      %s245 = scalar_select %p244, %s243, 255
      %s246 = smul.addr %s245, 2
      %s247 = smul.addr %s246, 4
      %s248 = scalar_lea.vmem %s0, %s247
      %s249 = smul.u32 64, %s19
      %p250 = scmp.lt.s32.totalorder %s20, 0
      %s251 = scalar_select %p250, %s20, 0
      %s252 = smul.addr %s251, 4
      %s253 = scalar_lea.vmem %s1, %s252
      %p254 = scmp.lt.s32.totalorder %s20, 0
      %s255 = scalar_select %p254, %s20, 0
      %s256 = scalar_lea.vmem %s2, %s255
      %p257 = scmp.lt.s32.totalorder %s20, 0
      %s258 = scalar_select %p257, %s20, 0
      %s259 = scalar_lea.vmem %s3, %s258
      %s260 = smul.u32 64, %s19
      %p261 = scmp.lt.s32.totalorder %s260, 255
      %s262 = scalar_select %p261, %s260, 255
      %p263 = scmp.lt.s32.totalorder %s20, 0
      %s264 = scalar_select %p263, %s20, 0
      %s265 = sadd.s32 %s264, %s262
      %s266 = smul.addr %s265, 4
      %s267 = scalar_lea.vmem %s4, %s266
      %s268 = smul.u32 64, %s19
      %v270 = vld [vmem:[%s248] sm:$0xff]
      %v271 = vld [vmem:[%s248 + $0x8] sm:$0xff]
      %v272 = vld [vmem:[%s248 + $0x10] sm:$0xff]
      %v273 = vld [vmem:[%s248 + $0x18] sm:$0xff]
      %v274 = vld [vmem:[%s248 + $0x20] sm:$0xff]
      %v275 = vld [vmem:[%s248 + $0x28] sm:$0xff]
      %v276 = vld [vmem:[%s248 + $0x30] sm:$0xff]
      %v277 = vld [vmem:[%s248 + $0x38] sm:$0xff]
      %v278 = vld [vmem:[%s248 + $0x40] sm:$0xff]
      %v279 = vld [vmem:[%s248 + $0x48] sm:$0xff]
      %v280 = vld [vmem:[%s248 + $0x50] sm:$0xff]
      %v281 = vld [vmem:[%s248 + $0x58] sm:$0xff]
      %v282 = vld [vmem:[%s248 + $0x60] sm:$0xff]
      %v283 = vld [vmem:[%s248 + $0x68] sm:$0xff]
      %v284 = vld [vmem:[%s248 + $0x70] sm:$0xff]
      %v285 = vld [vmem:[%s248 + $0x78] sm:$0xff]
      %v286 = vld [vmem:[%s248 + $0x80] sm:$0xff]
      %v287 = vld [vmem:[%s248 + $0x88] sm:$0xff]
      %v288 = vld [vmem:[%s248 + $0x90] sm:$0xff]
      %v289 = vld [vmem:[%s248 + $0x98] sm:$0xff]
      %v290 = vld [vmem:[%s248 + $0xa0] sm:$0xff]
      %v291 = vld [vmem:[%s248 + $0xa8] sm:$0xff]
      %v292 = vld [vmem:[%s248 + $0xb0] sm:$0xff]
      %v293 = vld [vmem:[%s248 + $0xb8] sm:$0xff]
      %v294 = vld [vmem:[%s248 + $0xc0] sm:$0xff]
      %v295 = vld [vmem:[%s248 + $0xc8] sm:$0xff]
      %v296 = vld [vmem:[%s248 + $0xd0] sm:$0xff]
      %v297 = vld [vmem:[%s248 + $0xd8] sm:$0xff]
      %v298 = vld [vmem:[%s248 + $0xe0] sm:$0xff]
      %v299 = vld [vmem:[%s248 + $0xe8] sm:$0xff]
      %v300 = vld [vmem:[%s248 + $0xf0] sm:$0xff]
      %v301 = vld [vmem:[%s248 + $0xf8] sm:$0xff]
      %v302 = vld [vmem:[%s248 + $0x100] sm:$0xff]
      %v303 = vld [vmem:[%s248 + $0x108] sm:$0xff]
      %v304 = vld [vmem:[%s248 + $0x110] sm:$0xff]
      %v305 = vld [vmem:[%s248 + $0x118] sm:$0xff]
      %v306 = vld [vmem:[%s248 + $0x120] sm:$0xff]
      %v307 = vld [vmem:[%s248 + $0x128] sm:$0xff]
      %v308 = vld [vmem:[%s248 + $0x130] sm:$0xff]
      %v309 = vld [vmem:[%s248 + $0x138] sm:$0xff]
      %v310 = vld [vmem:[%s248 + $0x140] sm:$0xff]
      %v311 = vld [vmem:[%s248 + $0x148] sm:$0xff]
      %v312 = vld [vmem:[%s248 + $0x150] sm:$0xff]
      %v313 = vld [vmem:[%s248 + $0x158] sm:$0xff]
      %v314 = vld [vmem:[%s248 + $0x160] sm:$0xff]
      %v315 = vld [vmem:[%s248 + $0x168] sm:$0xff]
      %v316 = vld [vmem:[%s248 + $0x170] sm:$0xff]
      %v317 = vld [vmem:[%s248 + $0x178] sm:$0xff]
      %v318 = vld [vmem:[%s248 + $0x180] sm:$0xff]
      %v319 = vld [vmem:[%s248 + $0x188] sm:$0xff]
      %v320 = vld [vmem:[%s248 + $0x190] sm:$0xff]
      %v321 = vld [vmem:[%s248 + $0x198] sm:$0xff]
      %v322 = vld [vmem:[%s248 + $0x1a0] sm:$0xff]
      %v323 = vld [vmem:[%s248 + $0x1a8] sm:$0xff]
      %v324 = vld [vmem:[%s248 + $0x1b0] sm:$0xff]
      %v325 = vld [vmem:[%s248 + $0x1b8] sm:$0xff]
      %v326 = vld [vmem:[%s248 + $0x1c0] sm:$0xff]
      %v327 = vld [vmem:[%s248 + $0x1c8] sm:$0xff]
      %v328 = vld [vmem:[%s248 + $0x1d0] sm:$0xff]
      %v329 = vld [vmem:[%s248 + $0x1d8] sm:$0xff]
      %v330 = vld [vmem:[%s248 + $0x1e0] sm:$0xff]
      %v331 = vld [vmem:[%s248 + $0x1e8] sm:$0xff]
      %v332 = vld [vmem:[%s248 + $0x1f0] sm:$0xff]
      %v333 = vld [vmem:[%s248 + $0x1f8] sm:$0xff]
      %v334 = vld [vmem:[%s253] sm:$0xf]
      %v335 = vld [vmem:[%s253 + $0x4] sm:$0xf]
      %v336 = vld [vmem:[%s253 + $0x8] sm:$0xf]
      %v337 = vld [vmem:[%s253 + $0xc] sm:$0xf]
      %v338 = vld [vmem:[%s253 + $0x10] sm:$0xf]
      %v339 = vld [vmem:[%s253 + $0x14] sm:$0xf]
      %v340 = vld [vmem:[%s253 + $0x18] sm:$0xf]
      %v341 = vld [vmem:[%s253 + $0x1c] sm:$0xf]
      %v342 = vld [vmem:[%s253 + $0x20] sm:$0xf]
      %v343 = vld [vmem:[%s253 + $0x24] sm:$0xf]
      %v344 = vld [vmem:[%s253 + $0x28] sm:$0xf]
      %v345 = vld [vmem:[%s253 + $0x2c] sm:$0xf]
      %v346 = vld [vmem:[%s253 + $0x30] sm:$0xf]
      %v347 = vld [vmem:[%s253 + $0x34] sm:$0xf]
      %v348 = vld [vmem:[%s253 + $0x38] sm:$0xf]
      %v349 = vld [vmem:[%s253 + $0x3c] sm:$0xf]
      %v350 = vld [vmem:[%s253 + $0x40] sm:$0xf]
      %v351 = vld [vmem:[%s253 + $0x44] sm:$0xf]
      %v352 = vld [vmem:[%s253 + $0x48] sm:$0xf]
      %v417 = vunpack.c.l.b16 %v270
      %v418 = vunpack.c.h.b16 %v270
      %v419 = vunpack.c.l.b16 %v271
      %v420 = vunpack.c.h.b16 %v271
      %v421 = vunpack.c.l.b16 %v272
      %v422 = vunpack.c.h.b16 %v272
      %v423 = vunpack.c.l.b16 %v273
      %v424 = vunpack.c.h.b16 %v273
      %v425 = vunpack.c.l.b16 %v274
      %v426 = vunpack.c.h.b16 %v274
      %v427 = vunpack.c.l.b16 %v275
      %v428 = vunpack.c.h.b16 %v275
      %v429 = vunpack.c.l.b16 %v276
      %v430 = vunpack.c.h.b16 %v276
      %v431 = vunpack.c.l.b16 %v277
      %v432 = vunpack.c.h.b16 %v277
      %v433 = vunpack.c.l.b16 %v278
      %v434 = vunpack.c.h.b16 %v278
      %v435 = vunpack.c.l.b16 %v279
      %v436 = vunpack.c.h.b16 %v279
      %v437 = vunpack.c.l.b16 %v280
      %v438 = vunpack.c.h.b16 %v280
      %v439 = vunpack.c.l.b16 %v281
      %v440 = vunpack.c.h.b16 %v281
      %v441 = vunpack.c.l.b16 %v282
      %v442 = vunpack.c.h.b16 %v282
      %v443 = vunpack.c.l.b16 %v283
      %v444 = vunpack.c.h.b16 %v283
      %v445 = vunpack.c.l.b16 %v284
      %v446 = vunpack.c.h.b16 %v284
      %v447 = vunpack.c.l.b16 %v285
      %v448 = vunpack.c.h.b16 %v285
      %v449 = vunpack.c.l.b16 %v286
      %v450 = vunpack.c.h.b16 %v286
      %v451 = vunpack.c.l.b16 %v287
      %v452 = vunpack.c.h.b16 %v287
      %v453 = vunpack.c.l.b16 %v288
      %v454 = vunpack.c.h.b16 %v288
      %v455 = vunpack.c.l.b16 %v289
      %v456 = vunpack.c.h.b16 %v289
      %v457 = vunpack.c.l.b16 %v290
      %v458 = vunpack.c.h.b16 %v290
      %v459 = vunpack.c.l.b16 %v291
      %v460 = vunpack.c.h.b16 %v291
      %v461 = vunpack.c.l.b16 %v292
      %v462 = vunpack.c.h.b16 %v292
      %v463 = vunpack.c.l.b16 %v293
      %v464 = vunpack.c.h.b16 %v293
      %v465 = vunpack.c.l.b16 %v294
      %v466 = vunpack.c.h.b16 %v294
      %v467 = vunpack.c.l.b16 %v295
      %v468 = vunpack.c.h.b16 %v295
      %v469 = vunpack.c.l.b16 %v296
      %v470 = vunpack.c.h.b16 %v296
      %v471 = vunpack.c.l.b16 %v297
      %v472 = vunpack.c.h.b16 %v297
      %v473 = vunpack.c.l.b16 %v298
      %v474 = vunpack.c.h.b16 %v298
      %v475 = vunpack.c.l.b16 %v299
      %v476 = vunpack.c.h.b16 %v299
      %v477 = vunpack.c.l.b16 %v300
      %v478 = vunpack.c.h.b16 %v300
      %v479 = vunpack.c.l.b16 %v301
      %v480 = vunpack.c.h.b16 %v301
      %v481 = vunpack.c.l.b16 %v302
      %v482 = vunpack.c.h.b16 %v302
      %v483 = vunpack.c.l.b16 %v303
      %v484 = vunpack.c.h.b16 %v303
      %v485 = vunpack.c.l.b16 %v304
      %v486 = vunpack.c.h.b16 %v304
      %v487 = vunpack.c.l.b16 %v305
      %v488 = vunpack.c.h.b16 %v305
      %v489 = vunpack.c.l.b16 %v306
      %v490 = vunpack.c.h.b16 %v306
      %v491 = vunpack.c.l.b16 %v307
      %v492 = vunpack.c.h.b16 %v307
      %v493 = vunpack.c.l.b16 %v308
      %v494 = vunpack.c.h.b16 %v308
      %v495 = vunpack.c.l.b16 %v309
      %v496 = vunpack.c.h.b16 %v309
      %v497 = vunpack.c.l.b16 %v310
      %v498 = vunpack.c.h.b16 %v310
      %v499 = vunpack.c.l.b16 %v311
      %v500 = vunpack.c.h.b16 %v311
      %v501 = vunpack.c.l.b16 %v312
      %v502 = vunpack.c.h.b16 %v312
      %v503 = vunpack.c.l.b16 %v313
      %v504 = vunpack.c.h.b16 %v313
      %v505 = vunpack.c.l.b16 %v314
      %v506 = vunpack.c.h.b16 %v314
      %v507 = vunpack.c.l.b16 %v315
      %v508 = vunpack.c.h.b16 %v315
      %v509 = vunpack.c.l.b16 %v316
      %v510 = vunpack.c.h.b16 %v316
      %v511 = vunpack.c.l.b16 %v317
      %v512 = vunpack.c.h.b16 %v317
      %v513 = vunpack.c.l.b16 %v318
      %v514 = vunpack.c.h.b16 %v318
      %v515 = vunpack.c.l.b16 %v319
      %v516 = vunpack.c.h.b16 %v319
      %v517 = vunpack.c.l.b16 %v320
      %v518 = vunpack.c.h.b16 %v320
      %v519 = vunpack.c.l.b16 %v321
      %v520 = vunpack.c.h.b16 %v321
      %v521 = vunpack.c.l.b16 %v322
      %v522 = vunpack.c.h.b16 %v322
      %v523 = vunpack.c.l.b16 %v323
      %v524 = vunpack.c.h.b16 %v323
      %v525 = vunpack.c.l.b16 %v324
      %v526 = vunpack.c.h.b16 %v324
      %v527 = vunpack.c.l.b16 %v325
      %v528 = vunpack.c.h.b16 %v325
      %v529 = vunpack.c.l.b16 %v326
      %v530 = vunpack.c.h.b16 %v326
      %v531 = vunpack.c.l.b16 %v327
      %v532 = vunpack.c.h.b16 %v327
      %v533 = vunpack.c.l.b16 %v328
      %v534 = vunpack.c.h.b16 %v328
      %v535 = vunpack.c.l.b16 %v329
      %v536 = vunpack.c.h.b16 %v329
      %v537 = vunpack.c.l.b16 %v330
      %v538 = vunpack.c.h.b16 %v330
      %v539 = vunpack.c.l.b16 %v331
      %v540 = vunpack.c.h.b16 %v331
      %v541 = vunpack.c.l.b16 %v332
      %v542 = vunpack.c.h.b16 %v332
      %v543 = vunpack.c.l.b16 %v333
      %v544 = vunpack.c.h.b16 %v333
      %v545 = vpack.c.b16 %v419, %v417
      %v546 = vpack.c.b16 %v420, %v418
      %v547 = vpack.c.b16 %v423, %v421
      %v548 = vpack.c.b16 %v424, %v422
      %v549 = vpack.c.b16 %v427, %v425
      %v550 = vpack.c.b16 %v428, %v426
      %v551 = vpack.c.b16 %v431, %v429
      %v552 = vpack.c.b16 %v432, %v430
      %v553 = vpack.c.b16 %v435, %v433
      %v554 = vpack.c.b16 %v436, %v434
      %v555 = vpack.c.b16 %v439, %v437
      %v556 = vpack.c.b16 %v440, %v438
      %v557 = vpack.c.b16 %v443, %v441
      %v558 = vpack.c.b16 %v444, %v442
      %v559 = vpack.c.b16 %v447, %v445
      %v560 = vpack.c.b16 %v448, %v446
      %v561 = vpack.c.b16 %v451, %v449
      %v562 = vpack.c.b16 %v452, %v450
      %v563 = vpack.c.b16 %v455, %v453
      %v564 = vpack.c.b16 %v456, %v454
      %v565 = vpack.c.b16 %v459, %v457
      %v566 = vpack.c.b16 %v460, %v458
      %v567 = vpack.c.b16 %v463, %v461
      %v568 = vpack.c.b16 %v464, %v462
      %v569 = vpack.c.b16 %v467, %v465
      %v570 = vpack.c.b16 %v468, %v466
      %v571 = vpack.c.b16 %v471, %v469
      %v572 = vpack.c.b16 %v472, %v470
      %v573 = vpack.c.b16 %v475, %v473
      %v574 = vpack.c.b16 %v476, %v474
      %v575 = vpack.c.b16 %v479, %v477
      %v576 = vpack.c.b16 %v480, %v478
      %v577 = vpack.c.b16 %v483, %v481
      %v578 = vpack.c.b16 %v484, %v482
      %v579 = vpack.c.b16 %v487, %v485
      %v580 = vpack.c.b16 %v488, %v486
      %v581 = vpack.c.b16 %v491, %v489
      %v582 = vpack.c.b16 %v492, %v490
      %v583 = vpack.c.b16 %v495, %v493
      %v584 = vpack.c.b16 %v496, %v494
      %v585 = vpack.c.b16 %v499, %v497
      %v586 = vpack.c.b16 %v500, %v498
      %v587 = vpack.c.b16 %v503, %v501
      %v588 = vpack.c.b16 %v504, %v502
      %v589 = vpack.c.b16 %v507, %v505
      %v590 = vpack.c.b16 %v508, %v506
      %v591 = vpack.c.b16 %v511, %v509
      %v592 = vpack.c.b16 %v512, %v510
      %v593 = vpack.c.b16 %v515, %v513
      %v594 = vpack.c.b16 %v516, %v514
      %v595 = vpack.c.b16 %v519, %v517
      %v596 = vpack.c.b16 %v520, %v518
      %v597 = vpack.c.b16 %v523, %v521
      %v598 = vpack.c.b16 %v524, %v522
      %v599 = vpack.c.b16 %v527, %v525
      %v600 = vpack.c.b16 %v528, %v526
      %v601 = vpack.c.b16 %v531, %v529
      %v602 = vpack.c.b16 %v532, %v530
      %v603 = vpack.c.b16 %v535, %v533
      %v604 = vpack.c.b16 %v536, %v534
      %v605 = vpack.c.b16 %v539, %v537
      %v606 = vpack.c.b16 %v540, %v538
      %v607 = vpack.c.b16 %v543, %v541
      %v608 = vpack.c.b16 %v544, %v542
      %v660 = vunpack.c.l.b16 %v334
      %v661 = vunpack.c.l.b16 %v335
      %v662 = vunpack.c.l.b16 %v336
      %v663 = vunpack.c.l.b16 %v337
      %v664 = vunpack.c.l.b16 %v338
      %v665 = vunpack.c.l.b16 %v339
      %v666 = vunpack.c.l.b16 %v340
      %v667 = vunpack.c.l.b16 %v341
      %v668 = vunpack.c.l.b16 %v342
      %v669 = vunpack.c.l.b16 %v343
      %v670 = vunpack.c.l.b16 %v344
      %v671 = vunpack.c.l.b16 %v345
      %v672 = vunpack.c.l.b16 %v346
      %v673 = vunpack.c.l.b16 %v347
      %v674 = vunpack.c.l.b16 %v348
      %v675 = vunpack.c.l.b16 %v349
      %v676 = vunpack.c.l.b16 %v350
      %v677 = vunpack.c.l.b16 %v351
      %v678 = vunpack.c.l.b16 %v352
      %v679 = vpack.c.b16 %v661, %v660
      %v680 = vpack.c.b16 %v663, %v662
      %v681 = vpack.c.b16 %v665, %v664
      %v682 = vpack.c.b16 %v667, %v666
      %v683 = vpack.c.b16 %v669, %v668
      %v684 = vpack.c.b16 %v671, %v670
      %v685 = vpack.c.b16 %v673, %v672
      %v686 = vpack.c.b16 %v675, %v674
      %v687 = vpack.c.b16 %v677, %v676
      %v688 = vpack.c.b16 %v678, %v678
      %vm698 = vcmask 195584
      %v700 = vsel %vm698, %v546, 0
      %v703 = vsel %vm698, %v548, 0
      %v706 = vsel %vm698, %v550, 0
      %v709 = vsel %vm698, %v552, 0
      %v712 = vsel %vm698, %v554, 0
      %v715 = vsel %vm698, %v556, 0
      %v718 = vsel %vm698, %v558, 0
      %v721 = vsel %vm698, %v560, 0
      %v724 = vsel %vm698, %v562, 0
      %v727 = vsel %vm698, %v564, 0
      %v730 = vsel %vm698, %v566, 0
      %v733 = vsel %vm698, %v568, 0
      %v736 = vsel %vm698, %v570, 0
      %v739 = vsel %vm698, %v572, 0
      %v742 = vsel %vm698, %v574, 0
      %v745 = vsel %vm698, %v576, 0
      %v748 = vsel %vm698, %v578, 0
      %v751 = vsel %vm698, %v580, 0
      %v754 = vsel %vm698, %v582, 0
      %v757 = vsel %vm698, %v584, 0
      %v760 = vsel %vm698, %v586, 0
      %v763 = vsel %vm698, %v588, 0
      %v766 = vsel %vm698, %v590, 0
      %v769 = vsel %vm698, %v592, 0
      %v772 = vsel %vm698, %v594, 0
      %v775 = vsel %vm698, %v596, 0
      %v778 = vsel %vm698, %v598, 0
      %v781 = vsel %vm698, %v600, 0
      %v784 = vsel %vm698, %v602, 0
      %v787 = vsel %vm698, %v604, 0
      %v790 = vsel %vm698, %v606, 0
      %v793 = vsel %vm698, %v608, 0
      %vm795 = vcmask 1043456
      %v797 = vsel %vm795, %v688, 0
      %799 = vmatprep.subr.bf16.mxu0 0
      %800 = vmatpush1.bf16.msra.mxu0 %v679
      %801 = vmatprep.subr.bf16.mxu0 0
      %802 = vmatpush1.bf16.msra.mxu0 %v680
      %803 = vmatprep.subr.bf16.mxu0 0
      %804 = vmatpush1.bf16.msra.mxu0 %v681
      %805 = vmatprep.subr.bf16.mxu0 0
      %806 = vmatpush1.bf16.msra.mxu0 %v682
      %807 = vmatprep.subr.bf16.mxu0 0
      %808 = vmatpush1.bf16.msra.mxu0 %v683
      %809 = vmatprep.subr.bf16.mxu0 0
      %810 = vmatpush1.bf16.msra.mxu0 %v684
      %811 = vmatprep.subr.bf16.mxu0 0
      %812 = vmatpush1.bf16.msra.mxu0 %v685
      %813 = vmatprep.subr.bf16.mxu0 0
      %814 = vmatpush1.bf16.msra.mxu0 %v686
      %815 = vmatprep.subr.bf16.mxu0 0
      %816 = vmatpush1.bf16.msra.mxu0 %v687
      %817 = vmatprep.subr.bf16.mxu0 0
      %818 = vmatpush1.bf16.msra.mxu0 %v797
      %819 = vmatprep.subr.bf16.mxu0 0
      %820 = vmatpush1.bf16.msra.mxu0 0
      %821 = vmatprep.subr.bf16.mxu0 0
      %822 = vmatpush1.bf16.msra.mxu0 0
      %823 = vmatprep.subr.bf16.mxu0 0
      %824 = vmatpush1.bf16.msra.mxu0 0
      %825 = vmatprep.subr.bf16.mxu0 0
      %826 = vmatpush1.bf16.msra.mxu0 0
      %827 = vmatprep.subr.bf16.mxu0 0
      %828 = vmatpush1.bf16.msra.mxu0 0
      %829 = vmatprep.subr.bf16.mxu0 0
      %830 = vmatpush1.bf16.msra.mxu0 0
      %831 = vmatprep.mubr.bf16.mxu0 %v700
      %832 = vmatmul.mubr.bf16.gmra.mrb[0].mxu0 %v545
      %v833 = vpop.f32.mrb[0].mxu0
      %v834 = vadd.f32 0.0, %v833
      %v835 = vpop.f32.mrb[0].mxu0
      %v836 = vpop.f32.mrb[0].mxu0
      %v837 = vadd.f32 0.0, %v836
      %v838 = vpop.f32.mrb[0].mxu0
      %839 = vmatprep.mubr.bf16.mxu0 %v703
      %840 = vmatmul.mubr.bf16.gmra.mrb[0].mxu0 %v547
      %v841 = vpop.f32.mrb[0].mxu0
      %v842 = vadd.f32 0.0, %v841
      %v843 = vpop.f32.mrb[0].mxu0
      %v844 = vpop.f32.mrb[0].mxu0
      %v845 = vadd.f32 0.0, %v844
      %v846 = vpop.f32.mrb[0].mxu0
      %847 = vmatprep.mubr.bf16.mxu0 %v706
      %848 = vmatmul.mubr.bf16.gmra.mrb[0].mxu0 %v549
      %v849 = vpop.f32.mrb[0].mxu0
      %v850 = vadd.f32 0.0, %v849
      %v851 = vpop.f32.mrb[0].mxu0
      %v852 = vpop.f32.mrb[0].mxu0
      %v853 = vadd.f32 0.0, %v852
      %v854 = vpop.f32.mrb[0].mxu0
      %855 = vmatprep.mubr.bf16.mxu0 %v709
      %856 = vmatmul.mubr.bf16.gmra.mrb[0].mxu0 %v551
      %v857 = vpop.f32.mrb[0].mxu0
      %v858 = vadd.f32 0.0, %v857
      %v859 = vpop.f32.mrb[0].mxu0
      %v860 = vpop.f32.mrb[0].mxu0
      %v861 = vadd.f32 0.0, %v860
      %v862 = vpop.f32.mrb[0].mxu0
      %863 = vmatprep.mubr.bf16.mxu0 %v712
      %864 = vmatmul.mubr.bf16.gmra.mrb[0].mxu0 %v553
      %v865 = vpop.f32.mrb[0].mxu0
      %v866 = vadd.f32 0.0, %v865
      %v867 = vpop.f32.mrb[0].mxu0
      %v868 = vpop.f32.mrb[0].mxu0
      %v869 = vadd.f32 0.0, %v868
      %v870 = vpop.f32.mrb[0].mxu0
      %871 = vmatprep.mubr.bf16.mxu0 %v715
      %872 = vmatmul.mubr.bf16.gmra.mrb[0].mxu0 %v555
      %v873 = vpop.f32.mrb[0].mxu0
      %v874 = vadd.f32 0.0, %v873
      %v875 = vpop.f32.mrb[0].mxu0
      %v876 = vpop.f32.mrb[0].mxu0
      %v877 = vadd.f32 0.0, %v876
      %v878 = vpop.f32.mrb[0].mxu0
      %879 = vmatprep.mubr.bf16.mxu0 %v718
      %880 = vmatmul.mubr.bf16.gmra.mrb[0].mxu0 %v557
      %v881 = vpop.f32.mrb[0].mxu0
      %v882 = vadd.f32 0.0, %v881
      %v883 = vpop.f32.mrb[0].mxu0
      %v884 = vpop.f32.mrb[0].mxu0
      %v885 = vadd.f32 0.0, %v884
      %v886 = vpop.f32.mrb[0].mxu0
      %887 = vmatprep.mubr.bf16.mxu0 %v721
      %888 = vmatmul.mubr.bf16.gmra.mrb[0].mxu0 %v559
      %v889 = vpop.f32.mrb[0].mxu0
      %v890 = vadd.f32 0.0, %v889
      %v891 = vpop.f32.mrb[0].mxu0
      %v892 = vpop.f32.mrb[0].mxu0
      %v893 = vadd.f32 0.0, %v892
      %v894 = vpop.f32.mrb[0].mxu0
      %895 = vmatprep.mubr.bf16.mxu0 %v724
      %896 = vmatmul.mubr.bf16.gmra.mrb[0].mxu0 %v561
      %v897 = vpop.f32.mrb[0].mxu0
      %v898 = vadd.f32 0.0, %v897
      %v899 = vpop.f32.mrb[0].mxu0
      %v900 = vpop.f32.mrb[0].mxu0
      %v901 = vadd.f32 0.0, %v900
      %v902 = vpop.f32.mrb[0].mxu0
      %903 = vmatprep.mubr.bf16.mxu0 %v727
      %904 = vmatmul.mubr.bf16.gmra.mrb[0].mxu0 %v563
      %v905 = vpop.f32.mrb[0].mxu0
      %v906 = vadd.f32 0.0, %v905
      %v907 = vpop.f32.mrb[0].mxu0
      %v908 = vpop.f32.mrb[0].mxu0
      %v909 = vadd.f32 0.0, %v908
      %v910 = vpop.f32.mrb[0].mxu0
      %911 = vmatprep.mubr.bf16.mxu0 %v730
      %912 = vmatmul.mubr.bf16.gmra.mrb[0].mxu0 %v565
      %v913 = vpop.f32.mrb[0].mxu0
      %v914 = vadd.f32 0.0, %v913
      %v915 = vpop.f32.mrb[0].mxu0
      %v916 = vpop.f32.mrb[0].mxu0
      %v917 = vadd.f32 0.0, %v916
      %v918 = vpop.f32.mrb[0].mxu0
      %919 = vmatprep.mubr.bf16.mxu0 %v733
      %920 = vmatmul.mubr.bf16.gmra.mrb[0].mxu0 %v567
      %v921 = vpop.f32.mrb[0].mxu0
      %v922 = vadd.f32 0.0, %v921
      %v923 = vpop.f32.mrb[0].mxu0
      %v924 = vpop.f32.mrb[0].mxu0
      %v925 = vadd.f32 0.0, %v924
      %v926 = vpop.f32.mrb[0].mxu0
      %927 = vmatprep.mubr.bf16.mxu0 %v736
      %928 = vmatmul.mubr.bf16.gmra.mrb[0].mxu0 %v569
      %v929 = vpop.f32.mrb[0].mxu0
      %v930 = vadd.f32 0.0, %v929
      %v931 = vpop.f32.mrb[0].mxu0
      %v932 = vpop.f32.mrb[0].mxu0
      %v933 = vadd.f32 0.0, %v932
      %v934 = vpop.f32.mrb[0].mxu0
      %935 = vmatprep.mubr.bf16.mxu0 %v739
      %936 = vmatmul.mubr.bf16.gmra.mrb[0].mxu0 %v571
      %v937 = vpop.f32.mrb[0].mxu0
      %v938 = vadd.f32 0.0, %v937
      %v939 = vpop.f32.mrb[0].mxu0
      %v940 = vpop.f32.mrb[0].mxu0
      %v941 = vadd.f32 0.0, %v940
      %v942 = vpop.f32.mrb[0].mxu0
      %943 = vmatprep.mubr.bf16.mxu0 %v742
      %944 = vmatmul.mubr.bf16.gmra.mrb[0].mxu0 %v573
      %v945 = vpop.f32.mrb[0].mxu0
      %v946 = vadd.f32 0.0, %v945
      %v947 = vpop.f32.mrb[0].mxu0
      %v948 = vpop.f32.mrb[0].mxu0
      %v949 = vadd.f32 0.0, %v948
      %v950 = vpop.f32.mrb[0].mxu0
      %951 = vmatprep.mubr.bf16.mxu0 %v745
      %952 = vmatmul.mubr.bf16.gmra.mrb[0].mxu0 %v575
      %v953 = vpop.f32.mrb[0].mxu0
      %v954 = vadd.f32 0.0, %v953
      %v955 = vpop.f32.mrb[0].mxu0
      %v956 = vpop.f32.mrb[0].mxu0
      %v957 = vadd.f32 0.0, %v956
      %v958 = vpop.f32.mrb[0].mxu0
      %959 = vmatprep.mubr.bf16.mxu0 %v748
      %960 = vmatmul.mubr.bf16.gmra.mrb[0].mxu0 %v577
      %v961 = vpop.f32.mrb[0].mxu0
      %v962 = vadd.f32 0.0, %v961
      %v963 = vpop.f32.mrb[0].mxu0
      %v964 = vpop.f32.mrb[0].mxu0
      %v965 = vadd.f32 0.0, %v964
      %v966 = vpop.f32.mrb[0].mxu0
      %967 = vmatprep.mubr.bf16.mxu0 %v751
      %968 = vmatmul.mubr.bf16.gmra.mrb[0].mxu0 %v579
      %v969 = vpop.f32.mrb[0].mxu0
      %v970 = vadd.f32 0.0, %v969
      %v971 = vpop.f32.mrb[0].mxu0
      %v972 = vpop.f32.mrb[0].mxu0
      %v973 = vadd.f32 0.0, %v972
      %v974 = vpop.f32.mrb[0].mxu0
      %975 = vmatprep.mubr.bf16.mxu0 %v754
      %976 = vmatmul.mubr.bf16.gmra.mrb[0].mxu0 %v581
      %v977 = vpop.f32.mrb[0].mxu0
      %v978 = vadd.f32 0.0, %v977
      %v979 = vpop.f32.mrb[0].mxu0
      %v980 = vpop.f32.mrb[0].mxu0
      %v981 = vadd.f32 0.0, %v980
      %v982 = vpop.f32.mrb[0].mxu0
      %983 = vmatprep.mubr.bf16.mxu0 %v757
      %984 = vmatmul.mubr.bf16.gmra.mrb[0].mxu0 %v583
      %v985 = vpop.f32.mrb[0].mxu0
      %v986 = vadd.f32 0.0, %v985
      %v987 = vpop.f32.mrb[0].mxu0
      %v988 = vpop.f32.mrb[0].mxu0
      %v989 = vadd.f32 0.0, %v988
      %v990 = vpop.f32.mrb[0].mxu0
      %991 = vmatprep.mubr.bf16.mxu0 %v760
      %992 = vmatmul.mubr.bf16.gmra.mrb[0].mxu0 %v585
      %v993 = vpop.f32.mrb[0].mxu0
      %v994 = vadd.f32 0.0, %v993
      %v995 = vpop.f32.mrb[0].mxu0
      %v996 = vpop.f32.mrb[0].mxu0
      %v997 = vadd.f32 0.0, %v996
      %v998 = vpop.f32.mrb[0].mxu0
      %999 = vmatprep.mubr.bf16.mxu0 %v763
      %1000 = vmatmul.mubr.bf16.gmra.mrb[0].mxu0 %v587
      %v1001 = vpop.f32.mrb[0].mxu0
      %v1002 = vadd.f32 0.0, %v1001
      %v1003 = vpop.f32.mrb[0].mxu0
      %v1004 = vpop.f32.mrb[0].mxu0
      %v1005 = vadd.f32 0.0, %v1004
      %v1006 = vpop.f32.mrb[0].mxu0
      %1007 = vmatprep.mubr.bf16.mxu0 %v766
      %1008 = vmatmul.mubr.bf16.gmra.mrb[0].mxu0 %v589
      %v1009 = vpop.f32.mrb[0].mxu0
      %v1010 = vadd.f32 0.0, %v1009
      %v1011 = vpop.f32.mrb[0].mxu0
      %v1012 = vpop.f32.mrb[0].mxu0
      %v1013 = vadd.f32 0.0, %v1012
      %v1014 = vpop.f32.mrb[0].mxu0
      %1015 = vmatprep.mubr.bf16.mxu0 %v769
      %1016 = vmatmul.mubr.bf16.gmra.mrb[0].mxu0 %v591
      %v1017 = vpop.f32.mrb[0].mxu0
      %v1018 = vadd.f32 0.0, %v1017
      %v1019 = vpop.f32.mrb[0].mxu0
      %v1020 = vpop.f32.mrb[0].mxu0
      %v1021 = vadd.f32 0.0, %v1020
      %v1022 = vpop.f32.mrb[0].mxu0
      %1023 = vmatprep.mubr.bf16.mxu0 %v772
      %1024 = vmatmul.mubr.bf16.gmra.mrb[0].mxu0 %v593
      %v1025 = vpop.f32.mrb[0].mxu0
      %v1026 = vadd.f32 0.0, %v1025
      %v1027 = vpop.f32.mrb[0].mxu0
      %v1028 = vpop.f32.mrb[0].mxu0
      %v1029 = vadd.f32 0.0, %v1028
      %v1030 = vpop.f32.mrb[0].mxu0
      %1031 = vmatprep.mubr.bf16.mxu0 %v775
      %1032 = vmatmul.mubr.bf16.gmra.mrb[0].mxu0 %v595
      %v1033 = vpop.f32.mrb[0].mxu0
      %v1034 = vadd.f32 0.0, %v1033
      %v1035 = vpop.f32.mrb[0].mxu0
      %v1036 = vpop.f32.mrb[0].mxu0
      %v1037 = vadd.f32 0.0, %v1036
      %v1038 = vpop.f32.mrb[0].mxu0
      %1039 = vmatprep.mubr.bf16.mxu0 %v778
      %1040 = vmatmul.mubr.bf16.gmra.mrb[0].mxu0 %v597
      %v1041 = vpop.f32.mrb[0].mxu0
      %v1042 = vadd.f32 0.0, %v1041
      %v1043 = vpop.f32.mrb[0].mxu0
      %v1044 = vpop.f32.mrb[0].mxu0
      %v1045 = vadd.f32 0.0, %v1044
      %v1046 = vpop.f32.mrb[0].mxu0
      %1047 = vmatprep.mubr.bf16.mxu0 %v781
      %1048 = vmatmul.mubr.bf16.gmra.mrb[0].mxu0 %v599
      %v1049 = vpop.f32.mrb[0].mxu0
      %v1050 = vadd.f32 0.0, %v1049
      %v1051 = vpop.f32.mrb[0].mxu0
      %v1052 = vpop.f32.mrb[0].mxu0
      %v1053 = vadd.f32 0.0, %v1052
      %v1054 = vpop.f32.mrb[0].mxu0
      %1055 = vmatprep.mubr.bf16.mxu0 %v784
      %1056 = vmatmul.mubr.bf16.gmra.mrb[0].mxu0 %v601
      %v1057 = vpop.f32.mrb[0].mxu0
      %v1058 = vadd.f32 0.0, %v1057
      %v1059 = vpop.f32.mrb[0].mxu0
      %v1060 = vpop.f32.mrb[0].mxu0
      %v1061 = vadd.f32 0.0, %v1060
      %v1062 = vpop.f32.mrb[0].mxu0
      %1063 = vmatprep.mubr.bf16.mxu0 %v787
      %1064 = vmatmul.mubr.bf16.gmra.mrb[0].mxu0 %v603
      %v1065 = vpop.f32.mrb[0].mxu0
      %v1066 = vadd.f32 0.0, %v1065
      %v1067 = vpop.f32.mrb[0].mxu0
      %v1068 = vpop.f32.mrb[0].mxu0
      %v1069 = vadd.f32 0.0, %v1068
      %v1070 = vpop.f32.mrb[0].mxu0
      %1071 = vmatprep.mubr.bf16.mxu0 %v790
      %1072 = vmatmul.mubr.bf16.gmra.mrb[0].mxu0 %v605
      %v1073 = vpop.f32.mrb[0].mxu0
      %v1074 = vadd.f32 0.0, %v1073
      %v1075 = vpop.f32.mrb[0].mxu0
      %v1076 = vpop.f32.mrb[0].mxu0
      %v1077 = vadd.f32 0.0, %v1076
      %v1078 = vpop.f32.mrb[0].mxu0
      %1079 = vmatprep.mubr.bf16.mxu0 %v793
      %1080 = vmatmul.mubr.bf16.gmra.mrb[0].mxu0 %v607
      %v1081 = vpop.f32.mrb[0].mxu0
      %v1082 = vadd.f32 0.0, %v1081
      %v1083 = vpop.f32.mrb[0].mxu0
      %v1084 = vpop.f32.mrb[0].mxu0
      %v1085 = vadd.f32 0.0, %v1084
      %v1086 = vpop.f32.mrb[0].mxu0
      %1087 = vdwg.mxu0
      %v1088 = vld [vmem:[%s256] sm:$0x1]
      %v1090 = vlaneseq
      %v1091 = vshrl.u32 %v1090, 7
      %v1092 = vsub.s32 0, %v1091
      %v1093 = vrot.slane %v1088, %v1092
      %v1095 = vmul.f32 %v834, %v1093
      %v1096 = vmul.f32 %v837, %v1093
      %v1097 = vmul.f32 %v842, %v1093
      %v1098 = vmul.f32 %v845, %v1093
      %v1099 = vmul.f32 %v850, %v1093
      %v1100 = vmul.f32 %v853, %v1093
      %v1101 = vmul.f32 %v858, %v1093
      %v1102 = vmul.f32 %v861, %v1093
      %v1103 = vmul.f32 %v866, %v1093
      %v1104 = vmul.f32 %v869, %v1093
      %v1105 = vmul.f32 %v874, %v1093
      %v1106 = vmul.f32 %v877, %v1093
      %v1107 = vmul.f32 %v882, %v1093
      %v1108 = vmul.f32 %v885, %v1093
      %v1109 = vmul.f32 %v890, %v1093
      %v1110 = vmul.f32 %v893, %v1093
      %v1111 = vmul.f32 %v898, %v1093
      %v1112 = vmul.f32 %v901, %v1093
      %v1113 = vmul.f32 %v906, %v1093
      %v1114 = vmul.f32 %v909, %v1093
      %v1115 = vmul.f32 %v914, %v1093
      %v1116 = vmul.f32 %v917, %v1093
      %v1117 = vmul.f32 %v922, %v1093
      %v1118 = vmul.f32 %v925, %v1093
      %v1119 = vmul.f32 %v930, %v1093
      %v1120 = vmul.f32 %v933, %v1093
      %v1121 = vmul.f32 %v938, %v1093
      %v1122 = vmul.f32 %v941, %v1093
      %v1123 = vmul.f32 %v946, %v1093
      %v1124 = vmul.f32 %v949, %v1093
      %v1125 = vmul.f32 %v954, %v1093
      %v1126 = vmul.f32 %v957, %v1093
      %v1127 = vmul.f32 %v962, %v1093
      %v1128 = vmul.f32 %v965, %v1093
      %v1129 = vmul.f32 %v970, %v1093
      %v1130 = vmul.f32 %v973, %v1093
      %v1131 = vmul.f32 %v978, %v1093
      %v1132 = vmul.f32 %v981, %v1093
      %v1133 = vmul.f32 %v986, %v1093
      %v1134 = vmul.f32 %v989, %v1093
      %v1135 = vmul.f32 %v994, %v1093
      %v1136 = vmul.f32 %v997, %v1093
      %v1137 = vmul.f32 %v1002, %v1093
      %v1138 = vmul.f32 %v1005, %v1093
      %v1139 = vmul.f32 %v1010, %v1093
      %v1140 = vmul.f32 %v1013, %v1093
      %v1141 = vmul.f32 %v1018, %v1093
      %v1142 = vmul.f32 %v1021, %v1093
      %v1143 = vmul.f32 %v1026, %v1093
      %v1144 = vmul.f32 %v1029, %v1093
      %v1145 = vmul.f32 %v1034, %v1093
      %v1146 = vmul.f32 %v1037, %v1093
      %v1147 = vmul.f32 %v1042, %v1093
      %v1148 = vmul.f32 %v1045, %v1093
      %v1149 = vmul.f32 %v1050, %v1093
      %v1150 = vmul.f32 %v1053, %v1093
      %v1151 = vmul.f32 %v1058, %v1093
      %v1152 = vmul.f32 %v1061, %v1093
      %v1153 = vmul.f32 %v1066, %v1093
      %v1154 = vmul.f32 %v1069, %v1093
      %v1155 = vmul.f32 %v1074, %v1093
      %v1156 = vmul.f32 %v1077, %v1093
      %v1157 = vmul.f32 %v1082, %v1093
      %v1158 = vmul.f32 %v1085, %v1093
      %v1159 = vld [vmem:[%s259] sm:$0x1]
      %v1161 = vlaneseq
      %v1162 = vshrl.u32 %v1161, 7
      %v1163 = vsub.s32 0, %v1162
      %v1164 = vrot.slane %v1159, %v1163
      %v1166 = vadd.f32 %v1095, %v1164
      %v1167 = vadd.f32 %v1096, %v1164
      %v1168 = vadd.f32 %v1097, %v1164
      %v1169 = vadd.f32 %v1098, %v1164
      %v1170 = vadd.f32 %v1099, %v1164
      %v1171 = vadd.f32 %v1100, %v1164
      %v1172 = vadd.f32 %v1101, %v1164
      %v1173 = vadd.f32 %v1102, %v1164
      %v1174 = vadd.f32 %v1103, %v1164
      %v1175 = vadd.f32 %v1104, %v1164
      %v1176 = vadd.f32 %v1105, %v1164
      %v1177 = vadd.f32 %v1106, %v1164
      %v1178 = vadd.f32 %v1107, %v1164
      %v1179 = vadd.f32 %v1108, %v1164
      %v1180 = vadd.f32 %v1109, %v1164
      %v1181 = vadd.f32 %v1110, %v1164
      %v1182 = vadd.f32 %v1111, %v1164
      %v1183 = vadd.f32 %v1112, %v1164
      %v1184 = vadd.f32 %v1113, %v1164
      %v1185 = vadd.f32 %v1114, %v1164
      %v1186 = vadd.f32 %v1115, %v1164
      %v1187 = vadd.f32 %v1116, %v1164
      %v1188 = vadd.f32 %v1117, %v1164
      %v1189 = vadd.f32 %v1118, %v1164
      %v1190 = vadd.f32 %v1119, %v1164
      %v1191 = vadd.f32 %v1120, %v1164
      %v1192 = vadd.f32 %v1121, %v1164
      %v1193 = vadd.f32 %v1122, %v1164
      %v1194 = vadd.f32 %v1123, %v1164
      %v1195 = vadd.f32 %v1124, %v1164
      %v1196 = vadd.f32 %v1125, %v1164
      %v1197 = vadd.f32 %v1126, %v1164
      %v1198 = vadd.f32 %v1127, %v1164
      %v1199 = vadd.f32 %v1128, %v1164
      %v1200 = vadd.f32 %v1129, %v1164
      %v1201 = vadd.f32 %v1130, %v1164
      %v1202 = vadd.f32 %v1131, %v1164
      %v1203 = vadd.f32 %v1132, %v1164
      %v1204 = vadd.f32 %v1133, %v1164
      %v1205 = vadd.f32 %v1134, %v1164
      %v1206 = vadd.f32 %v1135, %v1164
      %v1207 = vadd.f32 %v1136, %v1164
      %v1208 = vadd.f32 %v1137, %v1164
      %v1209 = vadd.f32 %v1138, %v1164
      %v1210 = vadd.f32 %v1139, %v1164
      %v1211 = vadd.f32 %v1140, %v1164
      %v1212 = vadd.f32 %v1141, %v1164
      %v1213 = vadd.f32 %v1142, %v1164
      %v1214 = vadd.f32 %v1143, %v1164
      %v1215 = vadd.f32 %v1144, %v1164
      %v1216 = vadd.f32 %v1145, %v1164
      %v1217 = vadd.f32 %v1146, %v1164
      %v1218 = vadd.f32 %v1147, %v1164
      %v1219 = vadd.f32 %v1148, %v1164
      %v1220 = vadd.f32 %v1149, %v1164
      %v1221 = vadd.f32 %v1150, %v1164
      %v1222 = vadd.f32 %v1151, %v1164
      %v1223 = vadd.f32 %v1152, %v1164
      %v1224 = vadd.f32 %v1153, %v1164
      %v1225 = vadd.f32 %v1154, %v1164
      %v1226 = vadd.f32 %v1155, %v1164
      %v1227 = vadd.f32 %v1156, %v1164
      %v1228 = vadd.f32 %v1157, %v1164
      %v1229 = vadd.f32 %v1158, %v1164
      %v1230 = vmax.f32 %v1166, 0.0
      %v1231 = vmax.f32 %v1167, 0.0
      %v1232 = vmax.f32 %v1168, 0.0
      %v1233 = vmax.f32 %v1169, 0.0
      %v1234 = vmax.f32 %v1170, 0.0
      %v1235 = vmax.f32 %v1171, 0.0
      %v1236 = vmax.f32 %v1172, 0.0
      %v1237 = vmax.f32 %v1173, 0.0
      %v1238 = vmax.f32 %v1174, 0.0
      %v1239 = vmax.f32 %v1175, 0.0
      %v1240 = vmax.f32 %v1176, 0.0
      %v1241 = vmax.f32 %v1177, 0.0
      %v1242 = vmax.f32 %v1178, 0.0
      %v1243 = vmax.f32 %v1179, 0.0
      %v1244 = vmax.f32 %v1180, 0.0
      %v1245 = vmax.f32 %v1181, 0.0
      %v1246 = vmax.f32 %v1182, 0.0
      %v1247 = vmax.f32 %v1183, 0.0
      %v1248 = vmax.f32 %v1184, 0.0
      %v1249 = vmax.f32 %v1185, 0.0
      %v1250 = vmax.f32 %v1186, 0.0
      %v1251 = vmax.f32 %v1187, 0.0
      %v1252 = vmax.f32 %v1188, 0.0
      %v1253 = vmax.f32 %v1189, 0.0
      %v1254 = vmax.f32 %v1190, 0.0
      %v1255 = vmax.f32 %v1191, 0.0
      %v1256 = vmax.f32 %v1192, 0.0
      %v1257 = vmax.f32 %v1193, 0.0
      %v1258 = vmax.f32 %v1194, 0.0
      %v1259 = vmax.f32 %v1195, 0.0
      %v1260 = vmax.f32 %v1196, 0.0
      %v1261 = vmax.f32 %v1197, 0.0
      %v1262 = vmax.f32 %v1198, 0.0
      %v1263 = vmax.f32 %v1199, 0.0
      %v1264 = vmax.f32 %v1200, 0.0
      %v1265 = vmax.f32 %v1201, 0.0
      %v1266 = vmax.f32 %v1202, 0.0
      %v1267 = vmax.f32 %v1203, 0.0
      %v1268 = vmax.f32 %v1204, 0.0
      %v1269 = vmax.f32 %v1205, 0.0
      %v1270 = vmax.f32 %v1206, 0.0
      %v1271 = vmax.f32 %v1207, 0.0
      %v1272 = vmax.f32 %v1208, 0.0
      %v1273 = vmax.f32 %v1209, 0.0
      %v1274 = vmax.f32 %v1210, 0.0
      %v1275 = vmax.f32 %v1211, 0.0
      %v1276 = vmax.f32 %v1212, 0.0
      %v1277 = vmax.f32 %v1213, 0.0
      %v1278 = vmax.f32 %v1214, 0.0
      %v1279 = vmax.f32 %v1215, 0.0
      %v1280 = vmax.f32 %v1216, 0.0
      %v1281 = vmax.f32 %v1217, 0.0
      %v1282 = vmax.f32 %v1218, 0.0
      %v1283 = vmax.f32 %v1219, 0.0
      %v1284 = vmax.f32 %v1220, 0.0
      %v1285 = vmax.f32 %v1221, 0.0
      %v1286 = vmax.f32 %v1222, 0.0
      %v1287 = vmax.f32 %v1223, 0.0
      %v1288 = vmax.f32 %v1224, 0.0
      %v1289 = vmax.f32 %v1225, 0.0
      %v1290 = vmax.f32 %v1226, 0.0
      %v1291 = vmax.f32 %v1227, 0.0
      %v1292 = vmax.f32 %v1228, 0.0
      %v1293 = vmax.f32 %v1229, 0.0
      %v1294 = vpack.c.bf16 %v1231, %v1230
      %v1295 = vpack.c.bf16 %v1233, %v1232
      %v1296 = vpack.c.bf16 %v1235, %v1234
      %v1297 = vpack.c.bf16 %v1237, %v1236
      %v1298 = vpack.c.bf16 %v1239, %v1238
      %v1299 = vpack.c.bf16 %v1241, %v1240
      %v1300 = vpack.c.bf16 %v1243, %v1242
      %v1301 = vpack.c.bf16 %v1245, %v1244
      %v1302 = vpack.c.bf16 %v1247, %v1246
      %v1303 = vpack.c.bf16 %v1249, %v1248
      %v1304 = vpack.c.bf16 %v1251, %v1250
      %v1305 = vpack.c.bf16 %v1253, %v1252
      %v1306 = vpack.c.bf16 %v1255, %v1254
      %v1307 = vpack.c.bf16 %v1257, %v1256
      %v1308 = vpack.c.bf16 %v1259, %v1258
      %v1309 = vpack.c.bf16 %v1261, %v1260
      %v1310 = vpack.c.bf16 %v1263, %v1262
      %v1311 = vpack.c.bf16 %v1265, %v1264
      %v1312 = vpack.c.bf16 %v1267, %v1266
      %v1313 = vpack.c.bf16 %v1269, %v1268
      %v1314 = vpack.c.bf16 %v1271, %v1270
      %v1315 = vpack.c.bf16 %v1273, %v1272
      %v1316 = vpack.c.bf16 %v1275, %v1274
      %v1317 = vpack.c.bf16 %v1277, %v1276
      %v1318 = vpack.c.bf16 %v1279, %v1278
      %v1319 = vpack.c.bf16 %v1281, %v1280
      %v1320 = vpack.c.bf16 %v1283, %v1282
      %v1321 = vpack.c.bf16 %v1285, %v1284
      %v1322 = vpack.c.bf16 %v1287, %v1286
      %v1323 = vpack.c.bf16 %v1289, %v1288
      %v1324 = vpack.c.bf16 %v1291, %v1290
      %v1325 = vpack.c.bf16 %v1293, %v1292
      %v1358 = vunpack.c.l.b16 %v1294
      %v1359 = vunpack.c.h.b16 %v1294
      %v1360 = vunpack.c.l.b16 %v1295
      %v1361 = vunpack.c.h.b16 %v1295
      %v1362 = vunpack.c.l.b16 %v1296
      %v1363 = vunpack.c.h.b16 %v1296
      %v1364 = vunpack.c.l.b16 %v1297
      %v1365 = vunpack.c.h.b16 %v1297
      %v1366 = vunpack.c.l.b16 %v1298
      %v1367 = vunpack.c.h.b16 %v1298
      %v1368 = vunpack.c.l.b16 %v1299
      %v1369 = vunpack.c.h.b16 %v1299
      %v1370 = vunpack.c.l.b16 %v1300
      %v1371 = vunpack.c.h.b16 %v1300
      %v1372 = vunpack.c.l.b16 %v1301
      %v1373 = vunpack.c.h.b16 %v1301
      %v1374 = vunpack.c.l.b16 %v1302
      %v1375 = vunpack.c.h.b16 %v1302
      %v1376 = vunpack.c.l.b16 %v1303
      %v1377 = vunpack.c.h.b16 %v1303
      %v1378 = vunpack.c.l.b16 %v1304
      %v1379 = vunpack.c.h.b16 %v1304
      %v1380 = vunpack.c.l.b16 %v1305
      %v1381 = vunpack.c.h.b16 %v1305
      %v1382 = vunpack.c.l.b16 %v1306
      %v1383 = vunpack.c.h.b16 %v1306
      %v1384 = vunpack.c.l.b16 %v1307
      %v1385 = vunpack.c.h.b16 %v1307
      %v1386 = vunpack.c.l.b16 %v1308
      %v1387 = vunpack.c.h.b16 %v1308
      %v1388 = vunpack.c.l.b16 %v1309
      %v1389 = vunpack.c.h.b16 %v1309
      %v1390 = vunpack.c.l.b16 %v1310
      %v1391 = vunpack.c.h.b16 %v1310
      %v1392 = vunpack.c.l.b16 %v1311
      %v1393 = vunpack.c.h.b16 %v1311
      %v1394 = vunpack.c.l.b16 %v1312
      %v1395 = vunpack.c.h.b16 %v1312
      %v1396 = vunpack.c.l.b16 %v1313
      %v1397 = vunpack.c.h.b16 %v1313
      %v1398 = vunpack.c.l.b16 %v1314
      %v1399 = vunpack.c.h.b16 %v1314
      %v1400 = vunpack.c.l.b16 %v1315
      %v1401 = vunpack.c.h.b16 %v1315
      %v1402 = vunpack.c.l.b16 %v1316
      %v1403 = vunpack.c.h.b16 %v1316
      %v1404 = vunpack.c.l.b16 %v1317
      %v1405 = vunpack.c.h.b16 %v1317
      %v1406 = vunpack.c.l.b16 %v1318
      %v1407 = vunpack.c.h.b16 %v1318
      %v1408 = vunpack.c.l.b16 %v1319
      %v1409 = vunpack.c.h.b16 %v1319
      %v1410 = vunpack.c.l.b16 %v1320
      %v1411 = vunpack.c.h.b16 %v1320
      %v1412 = vunpack.c.l.b16 %v1321
      %v1413 = vunpack.c.h.b16 %v1321
      %v1414 = vunpack.c.l.b16 %v1322
      %v1415 = vunpack.c.h.b16 %v1322
      %v1416 = vunpack.c.l.b16 %v1323
      %v1417 = vunpack.c.h.b16 %v1323
      %v1418 = vunpack.c.l.b16 %v1324
      %v1419 = vunpack.c.h.b16 %v1324
      %v1420 = vunpack.c.l.b16 %v1325
      %v1421 = vunpack.c.h.b16 %v1325
      %v1422 = vpack.c.b16 %v1358, %v1358
      %v1423 = vpack.c.b16 %v1359, %v1359
      %v1424 = vpack.c.b16 %v1360, %v1360
      %v1425 = vpack.c.b16 %v1361, %v1361
      %v1426 = vpack.c.b16 %v1362, %v1362
      %v1427 = vpack.c.b16 %v1363, %v1363
      %v1428 = vpack.c.b16 %v1364, %v1364
      %v1429 = vpack.c.b16 %v1365, %v1365
      %v1430 = vpack.c.b16 %v1366, %v1366
      %v1431 = vpack.c.b16 %v1367, %v1367
      %v1432 = vpack.c.b16 %v1368, %v1368
      %v1433 = vpack.c.b16 %v1369, %v1369
      %v1434 = vpack.c.b16 %v1370, %v1370
      %v1435 = vpack.c.b16 %v1371, %v1371
      %v1436 = vpack.c.b16 %v1372, %v1372
      %v1437 = vpack.c.b16 %v1373, %v1373
      %v1438 = vpack.c.b16 %v1374, %v1374
      %v1439 = vpack.c.b16 %v1375, %v1375
      %v1440 = vpack.c.b16 %v1376, %v1376
      %v1441 = vpack.c.b16 %v1377, %v1377
      %v1442 = vpack.c.b16 %v1378, %v1378
      %v1443 = vpack.c.b16 %v1379, %v1379
      %v1444 = vpack.c.b16 %v1380, %v1380
      %v1445 = vpack.c.b16 %v1381, %v1381
      %v1446 = vpack.c.b16 %v1382, %v1382
      %v1447 = vpack.c.b16 %v1383, %v1383
      %v1448 = vpack.c.b16 %v1384, %v1384
      %v1449 = vpack.c.b16 %v1385, %v1385
      %v1450 = vpack.c.b16 %v1386, %v1386
      %v1451 = vpack.c.b16 %v1387, %v1387
      %v1452 = vpack.c.b16 %v1388, %v1388
      %v1453 = vpack.c.b16 %v1389, %v1389
      %v1454 = vpack.c.b16 %v1390, %v1390
      %v1455 = vpack.c.b16 %v1391, %v1391
      %v1456 = vpack.c.b16 %v1392, %v1392
      %v1457 = vpack.c.b16 %v1393, %v1393
      %v1458 = vpack.c.b16 %v1394, %v1394
      %v1459 = vpack.c.b16 %v1395, %v1395
      %v1460 = vpack.c.b16 %v1396, %v1396
      %v1461 = vpack.c.b16 %v1397, %v1397
      %v1462 = vpack.c.b16 %v1398, %v1398
      %v1463 = vpack.c.b16 %v1399, %v1399
      %v1464 = vpack.c.b16 %v1400, %v1400
      %v1465 = vpack.c.b16 %v1401, %v1401
      %v1466 = vpack.c.b16 %v1402, %v1402
      %v1467 = vpack.c.b16 %v1403, %v1403
      %v1468 = vpack.c.b16 %v1404, %v1404
      %v1469 = vpack.c.b16 %v1405, %v1405
      %v1470 = vpack.c.b16 %v1406, %v1406
      %v1471 = vpack.c.b16 %v1407, %v1407
      %v1472 = vpack.c.b16 %v1408, %v1408
      %v1473 = vpack.c.b16 %v1409, %v1409
      %v1474 = vpack.c.b16 %v1410, %v1410
      %v1475 = vpack.c.b16 %v1411, %v1411
      %v1476 = vpack.c.b16 %v1412, %v1412
      %v1477 = vpack.c.b16 %v1413, %v1413
      %v1478 = vpack.c.b16 %v1414, %v1414
      %v1479 = vpack.c.b16 %v1415, %v1415
      %v1480 = vpack.c.b16 %v1416, %v1416
      %v1481 = vpack.c.b16 %v1417, %v1417
      %v1482 = vpack.c.b16 %v1418, %v1418
      %v1483 = vpack.c.b16 %v1419, %v1419
      %v1484 = vpack.c.b16 %v1420, %v1420
      %v1485 = vpack.c.b16 %v1421, %v1421
      %vm1550 = vcmask 519168
      %1551 = vst.msk [vmem:[%s267] sm:$0xf] %vm1550, %v1422
      %1552 = vst.msk [vmem:[%s267 + $0x4] sm:$0xf] %vm1550, %v1423
      %1553 = vst.msk [vmem:[%s267 + $0x8] sm:$0xf] %vm1550, %v1424
      %1554 = vst.msk [vmem:[%s267 + $0xc] sm:$0xf] %vm1550, %v1425
      %1555 = vst.msk [vmem:[%s267 + $0x10] sm:$0xf] %vm1550, %v1426
      %1556 = vst.msk [vmem:[%s267 + $0x14] sm:$0xf] %vm1550, %v1427
      %1557 = vst.msk [vmem:[%s267 + $0x18] sm:$0xf] %vm1550, %v1428
      %1558 = vst.msk [vmem:[%s267 + $0x1c] sm:$0xf] %vm1550, %v1429
      %1559 = vst.msk [vmem:[%s267 + $0x20] sm:$0xf] %vm1550, %v1430
      %1560 = vst.msk [vmem:[%s267 + $0x24] sm:$0xf] %vm1550, %v1431
      %1561 = vst.msk [vmem:[%s267 + $0x28] sm:$0xf] %vm1550, %v1432
      %1562 = vst.msk [vmem:[%s267 + $0x2c] sm:$0xf] %vm1550, %v1433
      %1563 = vst.msk [vmem:[%s267 + $0x30] sm:$0xf] %vm1550, %v1434
      %1564 = vst.msk [vmem:[%s267 + $0x34] sm:$0xf] %vm1550, %v1435
      %1565 = vst.msk [vmem:[%s267 + $0x38] sm:$0xf] %vm1550, %v1436
      %1566 = vst.msk [vmem:[%s267 + $0x3c] sm:$0xf] %vm1550, %v1437
      %1567 = vst.msk [vmem:[%s267 + $0x40] sm:$0xf] %vm1550, %v1438
      %1568 = vst.msk [vmem:[%s267 + $0x44] sm:$0xf] %vm1550, %v1439
      %1569 = vst.msk [vmem:[%s267 + $0x48] sm:$0xf] %vm1550, %v1440
      %1570 = vst.msk [vmem:[%s267 + $0x4c] sm:$0xf] %vm1550, %v1441
      %1571 = vst.msk [vmem:[%s267 + $0x50] sm:$0xf] %vm1550, %v1442
      %1572 = vst.msk [vmem:[%s267 + $0x54] sm:$0xf] %vm1550, %v1443
      %1573 = vst.msk [vmem:[%s267 + $0x58] sm:$0xf] %vm1550, %v1444
      %1574 = vst.msk [vmem:[%s267 + $0x5c] sm:$0xf] %vm1550, %v1445
      %1575 = vst.msk [vmem:[%s267 + $0x60] sm:$0xf] %vm1550, %v1446
      %1576 = vst.msk [vmem:[%s267 + $0x64] sm:$0xf] %vm1550, %v1447
      %1577 = vst.msk [vmem:[%s267 + $0x68] sm:$0xf] %vm1550, %v1448
      %1578 = vst.msk [vmem:[%s267 + $0x6c] sm:$0xf] %vm1550, %v1449
      %1579 = vst.msk [vmem:[%s267 + $0x70] sm:$0xf] %vm1550, %v1450
      %1580 = vst.msk [vmem:[%s267 + $0x74] sm:$0xf] %vm1550, %v1451
      %1581 = vst.msk [vmem:[%s267 + $0x78] sm:$0xf] %vm1550, %v1452
      %1582 = vst.msk [vmem:[%s267 + $0x7c] sm:$0xf] %vm1550, %v1453
      %1583 = vst.msk [vmem:[%s267 + $0x80] sm:$0xf] %vm1550, %v1454
      %1584 = vst.msk [vmem:[%s267 + $0x84] sm:$0xf] %vm1550, %v1455
      %1585 = vst.msk [vmem:[%s267 + $0x88] sm:$0xf] %vm1550, %v1456
      %1586 = vst.msk [vmem:[%s267 + $0x8c] sm:$0xf] %vm1550, %v1457
      %1587 = vst.msk [vmem:[%s267 + $0x90] sm:$0xf] %vm1550, %v1458
      %1588 = vst.msk [vmem:[%s267 + $0x94] sm:$0xf] %vm1550, %v1459
      %1589 = vst.msk [vmem:[%s267 + $0x98] sm:$0xf] %vm1550, %v1460
      %1590 = vst.msk [vmem:[%s267 + $0x9c] sm:$0xf] %vm1550, %v1461
      %1591 = vst.msk [vmem:[%s267 + $0xa0] sm:$0xf] %vm1550, %v1462
      %1592 = vst.msk [vmem:[%s267 + $0xa4] sm:$0xf] %vm1550, %v1463
      %1593 = vst.msk [vmem:[%s267 + $0xa8] sm:$0xf] %vm1550, %v1464
      %1594 = vst.msk [vmem:[%s267 + $0xac] sm:$0xf] %vm1550, %v1465
      %1595 = vst.msk [vmem:[%s267 + $0xb0] sm:$0xf] %vm1550, %v1466
      %1596 = vst.msk [vmem:[%s267 + $0xb4] sm:$0xf] %vm1550, %v1467
      %1597 = vst.msk [vmem:[%s267 + $0xb8] sm:$0xf] %vm1550, %v1468
      %1598 = vst.msk [vmem:[%s267 + $0xbc] sm:$0xf] %vm1550, %v1469
      %1599 = vst.msk [vmem:[%s267 + $0xc0] sm:$0xf] %vm1550, %v1470
      %1600 = vst.msk [vmem:[%s267 + $0xc4] sm:$0xf] %vm1550, %v1471
      %1601 = vst.msk [vmem:[%s267 + $0xc8] sm:$0xf] %vm1550, %v1472
      %1602 = vst.msk [vmem:[%s267 + $0xcc] sm:$0xf] %vm1550, %v1473
      %1603 = vst.msk [vmem:[%s267 + $0xd0] sm:$0xf] %vm1550, %v1474
      %1604 = vst.msk [vmem:[%s267 + $0xd4] sm:$0xf] %vm1550, %v1475
      %1605 = vst.msk [vmem:[%s267 + $0xd8] sm:$0xf] %vm1550, %v1476
      %1606 = vst.msk [vmem:[%s267 + $0xdc] sm:$0xf] %vm1550, %v1477
      %1607 = vst.msk [vmem:[%s267 + $0xe0] sm:$0xf] %vm1550, %v1478
      %1608 = vst.msk [vmem:[%s267 + $0xe4] sm:$0xf] %vm1550, %v1479
      %1609 = vst.msk [vmem:[%s267 + $0xe8] sm:$0xf] %vm1550, %v1480
      %1610 = vst.msk [vmem:[%s267 + $0xec] sm:$0xf] %vm1550, %v1481
      %1611 = vst.msk [vmem:[%s267 + $0xf0] sm:$0xf] %vm1550, %v1482
      %1612 = vst.msk [vmem:[%s267 + $0xf4] sm:$0xf] %vm1550, %v1483
      %1613 = vst.msk [vmem:[%s267 + $0xf8] sm:$0xf] %vm1550, %v1484
      %1614 = vst.msk [vmem:[%s267 + $0xfc] sm:$0xf] %vm1550, %v1485
      %s1615 = smul.u32 64, %s19
      %p1616 = scmp.lt.s32.totalorder %s1615, 255
      %s1617 = scalar_select %p1616, %s1615, 255
      %p1618 = scmp.lt.s32.totalorder %s20, 0
      %s1619 = scalar_select %p1618, %s20, 0
      %s1620 = sadd.s32 %s1619, %s1617
      %s1621 = smul.addr %s1620, 4
      %s1622 = scalar_lea.vmem %s4, %s1621
      // Predicated region
      $region37: #{tpu_custom_call.1} parent=35 // pred_check
        %p1623 = pneg %p151
      $region38: #{tpu_custom_call.1} parent=35 // pred_check_branch
        %1625 = sbr.rel (%p1623) target = $region40
      $region39: #{tpu_custom_call.1} parent=35 // pred_region
        %s1626 = smul.u32 64, %s19
      $region40: #{tpu_custom_call.1} parent=35 // pred_fallthru
        _
    $region36: #{tpu_custom_call.1} parent=5 // pred_fallthru
      _
    %p1627 = scmp.le.s32.totalorder 2, %s10
    // Predicated region
    $region41: #{tpu_custom_call.1} parent=5 // pred_check
      %p1628 = pneg %p1627
    $region42: #{tpu_custom_call.1} parent=5 // pred_check_branch
      %1630 = sbr.rel (%p1628) target = $region44
    $region43: #{tpu_custom_call.1} parent=5 // pred_region
      %s1631 = ssub.s32 %s10, 2
      // Predicated region
      $region45: #{tpu_custom_call.1} parent=43 // pred_check
        %p1632 = pneg %p157
      $region46: #{tpu_custom_call.1} parent=43 // pred_check_branch
        %1634 = sbr.rel (%p1632) target = $region48
      $region47: #{tpu_custom_call.1} parent=43 // pred_region
        %s1635 = smul.u32 64, %s21
        %p1636 = scmp.lt.s32.totalorder %s1635, 255
        %s1637 = scalar_select %p1636, %s1635, 255
        %p1638 = scmp.lt.s32.totalorder %s22, 0
        %s1639 = scalar_select %p1638, %s22, 0
        %s1640 = sadd.s32 %s1639, %s1637
        %s1641 = smul.addr %s1640, 4
        %s1642 = scalar_lea.vmem %s4, %s1641
      $region48: #{tpu_custom_call.1} parent=43 // pred_fallthru
        _
    $region44: #{tpu_custom_call.1} parent=5 // pred_fallthru
      _
  $region6: #{tpu_custom_call.1} parent=0 // loop_footer
    %s14 = sadd.s32 1, %s10
  $region7: #{tpu_custom_call.1} parent=0 // loop_footer_branch
    %9 = sbr.rel target = $region3
  $region8: #{tpu_custom_call.1} parent=0 // loop_exit
    _

</llo_original>
